<compile_context>
chip_gen: v7x
topology: tpu7x:2x2x1
jax: 0.10.0
libtpu: 0.0.40
codegen_flags: <defaults>
</compile_context>

<pallas_src>
import functools

import jax
import jax.numpy as jnp
from jax.experimental import pallas as pl
from jax.experimental.pallas import tpu as pltpu

_LANE = 128


def _round_up(x, m):
    return ((x + m - 1) // m) * m


def _fused_metricconvnet_kernel(a_ref, x_ref, *refs, n_layers, n_vertices, eps):
    """Whole network: L x (aggregate -> linear -> [ELU -> standardise])."""
    o_ref = refs[-1]
    wb = refs[:-1]                      # w0, b0, w1, b1, ..., w_{L-1}, b_{L-1}

    a = a_ref[...]                      # (N, N) bf16 row-normalised adjacency
    x = x_ref[...]                      # (N, Cpad_in) f32 padded features
    inv_nm1 = 1.0 / float(n_vertices - 1)   # hoisted (torch std is unbiased)

    for i in range(n_layers):
        w = wb[2 * i][...]              # (Cin_pad, Cout_pad) f32
        b = wb[2 * i + 1][...]          # (1, Cout_pad) f32
        cin, cout = w.shape

        if cout < cin:
            # Re-associate: A @ (x @ W) — fewer MXU FLOPs when output is narrower.
            h = jnp.dot(x, w, preferred_element_type=jnp.float32)
            z = jnp.dot(a, h.astype(jnp.bfloat16),
                        preferred_element_type=jnp.float32) + b
        else:
            agg = jnp.dot(a, x.astype(jnp.bfloat16),
                          preferred_element_type=jnp.float32)
            z = jnp.dot(agg, w, preferred_element_type=jnp.float32) + b

        if i == n_layers - 1:
            # Final conv ("conv6"): no nonlinearity / normalisation.
            o_ref[...] = z
        else:
            # ELU (alpha=1); exp runs on the EUP slot.  (exp(z)-1 kept instead
            # of expm1 for lowering compatibility; abs error is ~float eps.)
            h = jnp.where(z > 0, z, jnp.exp(z) - 1.0)
            # (h - mean(dim=0)) / (std(dim=0) + eps), unbiased std like torch.
            mean = jnp.mean(h, axis=0, keepdims=True)
            var = jnp.sum((h - mean) ** 2, axis=0, keepdims=True) * inv_nm1
            inv_std = pl.reciprocal(jnp.sqrt(var) + eps, approx=True)
            x = (h - mean) * inv_std


def metric_conv_net_forward(adj_bf16, x_pad, params_padded, *, eps=1e-5):
    """Single fused pallas_call over the whole network."""
    n = x_pad.shape[0]
    n_layers = len(params_padded)
    cout_last = params_padded[-1][0].shape[1]

    flat_params = []
    in_specs = [
        pl.BlockSpec(adj_bf16.shape, lambda i: (0, 0)),   # adjacency (resident)
        pl.BlockSpec(x_pad.shape, lambda i: (0, 0)),      # padded features
    ]
    for (w, b) in params_padded:
        flat_params += [w, b]
        in_specs += [pl.BlockSpec(w.shape, lambda i: (0, 0)),
                     pl.BlockSpec(b.shape, lambda i: (0, 0))]

    kernel = functools.partial(
        _fused_metricconvnet_kernel,
        n_layers=n_layers, n_vertices=n, eps=eps)

    return pl.pallas_call(
        kernel,
        out_shape=jax.ShapeDtypeStruct((n, cout_last), jnp.float32),
        grid=(1,),
        in_specs=in_specs,
        out_specs=pl.BlockSpec((n, cout_last), lambda i: (0, 0)),
        compiler_params=pltpu.CompilerParams(
            dimension_semantics=("arbitrary",)),
    )(adj_bf16, x_pad, *flat_params)


def build_vanilla_operator(n, edges):
    """Row-normalised adjacency with self loops ('vanilla' metric), bf16."""
    src, dst = edges[0], edges[1]
    a = jnp.zeros((n, n), jnp.float32)
    a = a.at[src, dst].set(1.0)
    a = a.at[dst, src].set(1.0)
    diag = jnp.arange(n)
    a = a.at[diag, diag].set(1.0)   # set (not add): no double-weighted self loop
    deg = jnp.sum(a, axis=1, keepdims=True)
    # bf16 halves DMA bytes for the N^2 operand; A in [0, 1] so loss is tiny.
    return (a / deg).astype(jnp.bfloat16)


class MetricConvNetPallas:
    """JAX/Pallas equivalent of MetricConvNet (non-classification path,
    default layers in_feats -> 16 -> 32 -> 64 -> 128 -> 256 -> out_feats)."""

    def __init__(self, in_feats, out_feats, key, layers=(16, 32, 64, 128, 256)):
        dims = [in_feats] + list(layers) + [out_feats]
        self.in_feats = in_feats
        self.out_feats = out_feats
        self.in_pad = _round_up(in_feats, _LANE)
        self.params = []                # channel-padded (lane-dense) weights
        for i in range(len(dims) - 1):
            key, kw = jax.random.split(key)
            fan_in, fan_out = dims[i], dims[i + 1]
            bound = (6.0 / (fan_in + fan_out)) ** 0.5   # xavier-uniform-ish init
            w = jax.random.uniform(kw, (fan_in, fan_out), jnp.float32,
                                   minval=-bound, maxval=bound)
            cin_p = _round_up(fan_in, _LANE)
            cout_p = _round_up(fan_out, _LANE)
            w_pad = jnp.zeros((cin_p, cout_p), jnp.float32)
            w_pad = w_pad.at[:fan_in, :fan_out].set(w)
            b_pad = jnp.zeros((1, cout_p), jnp.float32)
            self.params.append((w_pad, b_pad))

    def __call__(self, features, vertices, edges, faces, eps=1e-5):
        del vertices, faces  # 'vanilla' MetricConv only uses connectivity
        n = features.shape[0]
        adj = build_vanilla_operator(n, edges)
        x_pad = jnp.zeros((n, self.in_pad), jnp.float32)
        x_pad = x_pad.at[:, :self.in_feats].set(features.astype(jnp.float32))
        out_pad = metric_conv_net_forward(adj, x_pad, self.params, eps=eps)
        return out_pad[:, :self.out_feats]


if __name__ == "__main__":
    key = jax.random.PRNGKey(0)
    k_feat, k_vert, k_model = jax.random.split(key, 3)

    n_vertices = 64
    in_feats = 6
    out_feats = 4

    features = jax.random.normal(k_feat, (n_vertices, in_feats), jnp.float32)
    vertices = jax.random.normal(k_vert, (n_vertices, 3), jnp.float32)
    # simple ring mesh connectivity (2, E) + dummy faces (F, 3)
    idx = jnp.arange(n_vertices, dtype=jnp.int32)
    edges = jnp.stack([idx, (idx + 1) % n_vertices], axis=0)
    faces = jnp.stack([idx, (idx + 1) % n_vertices, (idx + 2) % n_vertices],
                      axis=1).astype(jnp.int32)

    model = MetricConvNetPallas(in_feats, out_feats, k_model)
    out = model(features, vertices, edges, faces)
    jax.block_until_ready(out)
    assert out.shape == (n_vertices, out_feats)
    assert bool(jnp.all(jnp.isfinite(out)))
    print("KERNEL_OK")
</pallas_src>

<mosaic_0001>
module attributes {stable_mosaic.version = 11 : i64} {
  func.func @_fused_metricconvnet_kernel(%arg0: i32, %arg1: memref<64x64xbf16, #tpu.memory_space<vmem>>, %arg2: memref<64x128xf32, #tpu.memory_space<vmem>>, %arg3: memref<128x128xf32, #tpu.memory_space<vmem>>, %arg4: memref<1x128xf32, #tpu.memory_space<vmem>>, %arg5: memref<128x128xf32, #tpu.memory_space<vmem>>, %arg6: memref<1x128xf32, #tpu.memory_space<vmem>>, %arg7: memref<128x128xf32, #tpu.memory_space<vmem>>, %arg8: memref<1x128xf32, #tpu.memory_space<vmem>>, %arg9: memref<128x128xf32, #tpu.memory_space<vmem>>, %arg10: memref<1x128xf32, #tpu.memory_space<vmem>>, %arg11: memref<128x256xf32, #tpu.memory_space<vmem>>, %arg12: memref<1x256xf32, #tpu.memory_space<vmem>>, %arg13: memref<256x128xf32, #tpu.memory_space<vmem>>, %arg14: memref<1x128xf32, #tpu.memory_space<vmem>>, %arg15: memref<64x128xf32, #tpu.memory_space<vmem>>) attributes {dimension_semantics = [#tpu.dimension_semantics<arbitrary>], iteration_bounds = array<i64: 1>, scalar_prefetch = 0 : i64, scratch_operands = 0 : i64, tpu.core_type = #tpu.core_type<tc>, window_params = [{pipeline_mode = #tpu.pipeline_mode<synchronous>, transform_indices = @transform_0, window_bounds = array<i64: 64, 64>}, {pipeline_mode = #tpu.pipeline_mode<synchronous>, transform_indices = @transform_1, window_bounds = array<i64: 64, 128>}, {pipeline_mode = #tpu.pipeline_mode<synchronous>, transform_indices = @transform_2, window_bounds = array<i64: 128, 128>}, {pipeline_mode = #tpu.pipeline_mode<synchronous>, transform_indices = @transform_3, window_bounds = array<i64: 1, 128>}, {pipeline_mode = #tpu.pipeline_mode<synchronous>, transform_indices = @transform_4, window_bounds = array<i64: 128, 128>}, {pipeline_mode = #tpu.pipeline_mode<synchronous>, transform_indices = @transform_5, window_bounds = array<i64: 1, 128>}, {pipeline_mode = #tpu.pipeline_mode<synchronous>, transform_indices = @transform_6, window_bounds = array<i64: 128, 128>}, {pipeline_mode = #tpu.pipeline_mode<synchronous>, transform_indices = @transform_7, window_bounds = array<i64: 1, 128>}, {pipeline_mode = #tpu.pipeline_mode<synchronous>, transform_indices = @transform_8, window_bounds = array<i64: 128, 128>}, {pipeline_mode = #tpu.pipeline_mode<synchronous>, transform_indices = @transform_9, window_bounds = array<i64: 1, 128>}, {pipeline_mode = #tpu.pipeline_mode<synchronous>, transform_indices = @transform_10, window_bounds = array<i64: 128, 256>}, {pipeline_mode = #tpu.pipeline_mode<synchronous>, transform_indices = @transform_11, window_bounds = array<i64: 1, 256>}, {pipeline_mode = #tpu.pipeline_mode<synchronous>, transform_indices = @transform_12, window_bounds = array<i64: 256, 128>}, {pipeline_mode = #tpu.pipeline_mode<synchronous>, transform_indices = @transform_13, window_bounds = array<i64: 1, 128>}, {pipeline_mode = #tpu.pipeline_mode<synchronous>, transform_indices = @transform_14, window_bounds = array<i64: 64, 128>}]} {
    %c0 = arith.constant 0 : index
    %c0_0 = arith.constant 0 : index
    %0 = vector.load %arg1[%c0, %c0_0] : memref<64x64xbf16, #tpu.memory_space<vmem>>, vector<64x64xbf16>
    %c0_1 = arith.constant 0 : index
    %c0_2 = arith.constant 0 : index
    %1 = vector.load %arg2[%c0_1, %c0_2] : memref<64x128xf32, #tpu.memory_space<vmem>>, vector<64x128xf32>
    %c0_3 = arith.constant 0 : index
    %c0_4 = arith.constant 0 : index
    %2 = vector.load %arg3[%c0_3, %c0_4] : memref<128x128xf32, #tpu.memory_space<vmem>>, vector<128x128xf32>
    %c0_5 = arith.constant 0 : index
    %c0_6 = arith.constant 0 : index
    %3 = vector.load %arg4[%c0_5, %c0_6] : memref<1x128xf32, #tpu.memory_space<vmem>>, vector<1x128xf32>
    %4 = arith.truncf %1 : vector<64x128xf32> to vector<64x128xbf16>
    %cst = arith.constant dense<0.000000e+00> : vector<64x128xf32>
    %5 = tpu.matmul %0, %4, %cst {dimension_numbers = #tpu.dot_dimension_numbers<[1], [0], [0], [1], [0, 0, 1, 1], [], []>} : vector<64x64xbf16>, vector<64x128xbf16>, vector<64x128xf32> -> vector<64x128xf32>
    %cst_7 = arith.constant dense<0.000000e+00> : vector<64x128xf32>
    %6 = tpu.matmul %5, %2, %cst_7 {dimension_numbers = #tpu.dot_dimension_numbers<[1], [0], [0], [1], [0, 0, 1, 1], [], []>} : vector<64x128xf32>, vector<128x128xf32>, vector<64x128xf32> -> vector<64x128xf32>
    %7 = vector.broadcast %3 : vector<1x128xf32> to vector<64x128xf32>
    %8 = arith.addf %6, %7 : vector<64x128xf32>
    %cst_8 = arith.constant 0.000000e+00 : f32
    %9 = vector.broadcast %cst_8 : f32 to vector<64x128xf32>
    %10 = arith.cmpf ogt, %8, %9 : vector<64x128xf32>
    %11 = math.exp %8 : vector<64x128xf32>
    %cst_9 = arith.constant 1.000000e+00 : f32
    %12 = vector.broadcast %cst_9 : f32 to vector<64x128xf32>
    %13 = arith.subf %11, %12 : vector<64x128xf32>
    %14 = arith.select %10, %8, %13 : vector<64x128xi1>, vector<64x128xf32>
    %cst_10 = arith.constant dense<0.000000e+00> : vector<128xf32>
    %15 = vector.multi_reduction <add>, %14, %cst_10 [0] : vector<64x128xf32> to vector<128xf32>
    %16 = vector.shape_cast %15 : vector<128xf32> to vector<1x128xf32>
    %cst_11 = arith.constant 6.400000e+01 : f32
    %17 = vector.broadcast %cst_11 : f32 to vector<1x128xf32>
    %18 = arith.divf %16, %17 : vector<1x128xf32>
    %19 = vector.broadcast %18 : vector<1x128xf32> to vector<64x128xf32>
    %20 = arith.subf %14, %19 : vector<64x128xf32>
    %21 = arith.mulf %20, %20 : vector<64x128xf32>
    %cst_12 = arith.constant dense<0.000000e+00> : vector<128xf32>
    %22 = vector.multi_reduction <add>, %21, %cst_12 [0] : vector<64x128xf32> to vector<128xf32>
    %23 = vector.shape_cast %22 : vector<128xf32> to vector<1x128xf32>
    %cst_13 = arith.constant 0.0158730168 : f32
    %24 = vector.broadcast %cst_13 : f32 to vector<1x128xf32>
    %25 = arith.mulf %23, %24 : vector<1x128xf32>
    %26 = math.sqrt %25 : vector<1x128xf32>
    %cst_14 = arith.constant 9.99999974E-6 : f32
    %27 = vector.broadcast %cst_14 : f32 to vector<1x128xf32>
    %28 = arith.addf %26, %27 : vector<1x128xf32>
    %29 = tpu.reciprocal %28 {approx = true} : vector<1x128xf32> -> vector<1x128xf32>
    %30 = vector.broadcast %18 : vector<1x128xf32> to vector<64x128xf32>
    %31 = arith.subf %14, %30 : vector<64x128xf32>
    %32 = vector.broadcast %29 : vector<1x128xf32> to vector<64x128xf32>
    %33 = arith.mulf %31, %32 : vector<64x128xf32>
    %c0_15 = arith.constant 0 : index
    %c0_16 = arith.constant 0 : index
    %34 = vector.load %arg5[%c0_15, %c0_16] : memref<128x128xf32, #tpu.memory_space<vmem>>, vector<128x128xf32>
    %c0_17 = arith.constant 0 : index
    %c0_18 = arith.constant 0 : index
    %35 = vector.load %arg6[%c0_17, %c0_18] : memref<1x128xf32, #tpu.memory_space<vmem>>, vector<1x128xf32>
    %36 = arith.truncf %33 : vector<64x128xf32> to vector<64x128xbf16>
    %cst_19 = arith.constant dense<0.000000e+00> : vector<64x128xf32>
    %37 = tpu.matmul %0, %36, %cst_19 {dimension_numbers = #tpu.dot_dimension_numbers<[1], [0], [0], [1], [0, 0, 1, 1], [], []>} : vector<64x64xbf16>, vector<64x128xbf16>, vector<64x128xf32> -> vector<64x128xf32>
    %cst_20 = arith.constant dense<0.000000e+00> : vector<64x128xf32>
    %38 = tpu.matmul %37, %34, %cst_20 {dimension_numbers = #tpu.dot_dimension_numbers<[1], [0], [0], [1], [0, 0, 1, 1], [], []>} : vector<64x128xf32>, vector<128x128xf32>, vector<64x128xf32> -> vector<64x128xf32>
    %39 = vector.broadcast %35 : vector<1x128xf32> to vector<64x128xf32>
    %40 = arith.addf %38, %39 : vector<64x128xf32>
    %cst_21 = arith.constant 0.000000e+00 : f32
    %41 = vector.broadcast %cst_21 : f32 to vector<64x128xf32>
    %42 = arith.cmpf ogt, %40, %41 : vector<64x128xf32>
    %43 = math.exp %40 : vector<64x128xf32>
    %cst_22 = arith.constant 1.000000e+00 : f32
    %44 = vector.broadcast %cst_22 : f32 to vector<64x128xf32>
    %45 = arith.subf %43, %44 : vector<64x128xf32>
    %46 = arith.select %42, %40, %45 : vector<64x128xi1>, vector<64x128xf32>
    %cst_23 = arith.constant dense<0.000000e+00> : vector<128xf32>
    %47 = vector.multi_reduction <add>, %46, %cst_23 [0] : vector<64x128xf32> to vector<128xf32>
    %48 = vector.shape_cast %47 : vector<128xf32> to vector<1x128xf32>
    %cst_24 = arith.constant 6.400000e+01 : f32
    %49 = vector.broadcast %cst_24 : f32 to vector<1x128xf32>
    %50 = arith.divf %48, %49 : vector<1x128xf32>
    %51 = vector.broadcast %50 : vector<1x128xf32> to vector<64x128xf32>
    %52 = arith.subf %46, %51 : vector<64x128xf32>
    %53 = arith.mulf %52, %52 : vector<64x128xf32>
    %cst_25 = arith.constant dense<0.000000e+00> : vector<128xf32>
    %54 = vector.multi_reduction <add>, %53, %cst_25 [0] : vector<64x128xf32> to vector<128xf32>
    %55 = vector.shape_cast %54 : vector<128xf32> to vector<1x128xf32>
    %cst_26 = arith.constant 0.0158730168 : f32
    %56 = vector.broadcast %cst_26 : f32 to vector<1x128xf32>
    %57 = arith.mulf %55, %56 : vector<1x128xf32>
    %58 = math.sqrt %57 : vector<1x128xf32>
    %cst_27 = arith.constant 9.99999974E-6 : f32
    %59 = vector.broadcast %cst_27 : f32 to vector<1x128xf32>
    %60 = arith.addf %58, %59 : vector<1x128xf32>
    %61 = tpu.reciprocal %60 {approx = true} : vector<1x128xf32> -> vector<1x128xf32>
    %62 = vector.broadcast %50 : vector<1x128xf32> to vector<64x128xf32>
    %63 = arith.subf %46, %62 : vector<64x128xf32>
    %64 = vector.broadcast %61 : vector<1x128xf32> to vector<64x128xf32>
    %65 = arith.mulf %63, %64 : vector<64x128xf32>
    %c0_28 = arith.constant 0 : index
    %c0_29 = arith.constant 0 : index
    %66 = vector.load %arg7[%c0_28, %c0_29] : memref<128x128xf32, #tpu.memory_space<vmem>>, vector<128x128xf32>
    %c0_30 = arith.constant 0 : index
    %c0_31 = arith.constant 0 : index
    %67 = vector.load %arg8[%c0_30, %c0_31] : memref<1x128xf32, #tpu.memory_space<vmem>>, vector<1x128xf32>
    %68 = arith.truncf %65 : vector<64x128xf32> to vector<64x128xbf16>
    %cst_32 = arith.constant dense<0.000000e+00> : vector<64x128xf32>
    %69 = tpu.matmul %0, %68, %cst_32 {dimension_numbers = #tpu.dot_dimension_numbers<[1], [0], [0], [1], [0, 0, 1, 1], [], []>} : vector<64x64xbf16>, vector<64x128xbf16>, vector<64x128xf32> -> vector<64x128xf32>
    %cst_33 = arith.constant dense<0.000000e+00> : vector<64x128xf32>
    %70 = tpu.matmul %69, %66, %cst_33 {dimension_numbers = #tpu.dot_dimension_numbers<[1], [0], [0], [1], [0, 0, 1, 1], [], []>} : vector<64x128xf32>, vector<128x128xf32>, vector<64x128xf32> -> vector<64x128xf32>
    %71 = vector.broadcast %67 : vector<1x128xf32> to vector<64x128xf32>
    %72 = arith.addf %70, %71 : vector<64x128xf32>
    %cst_34 = arith.constant 0.000000e+00 : f32
    %73 = vector.broadcast %cst_34 : f32 to vector<64x128xf32>
    %74 = arith.cmpf ogt, %72, %73 : vector<64x128xf32>
    %75 = math.exp %72 : vector<64x128xf32>
    %cst_35 = arith.constant 1.000000e+00 : f32
    %76 = vector.broadcast %cst_35 : f32 to vector<64x128xf32>
    %77 = arith.subf %75, %76 : vector<64x128xf32>
    %78 = arith.select %74, %72, %77 : vector<64x128xi1>, vector<64x128xf32>
    %cst_36 = arith.constant dense<0.000000e+00> : vector<128xf32>
    %79 = vector.multi_reduction <add>, %78, %cst_36 [0] : vector<64x128xf32> to vector<128xf32>
    %80 = vector.shape_cast %79 : vector<128xf32> to vector<1x128xf32>
    %cst_37 = arith.constant 6.400000e+01 : f32
    %81 = vector.broadcast %cst_37 : f32 to vector<1x128xf32>
    %82 = arith.divf %80, %81 : vector<1x128xf32>
    %83 = vector.broadcast %82 : vector<1x128xf32> to vector<64x128xf32>
    %84 = arith.subf %78, %83 : vector<64x128xf32>
    %85 = arith.mulf %84, %84 : vector<64x128xf32>
    %cst_38 = arith.constant dense<0.000000e+00> : vector<128xf32>
    %86 = vector.multi_reduction <add>, %85, %cst_38 [0] : vector<64x128xf32> to vector<128xf32>
    %87 = vector.shape_cast %86 : vector<128xf32> to vector<1x128xf32>
    %cst_39 = arith.constant 0.0158730168 : f32
    %88 = vector.broadcast %cst_39 : f32 to vector<1x128xf32>
    %89 = arith.mulf %87, %88 : vector<1x128xf32>
    %90 = math.sqrt %89 : vector<1x128xf32>
    %cst_40 = arith.constant 9.99999974E-6 : f32
    %91 = vector.broadcast %cst_40 : f32 to vector<1x128xf32>
    %92 = arith.addf %90, %91 : vector<1x128xf32>
    %93 = tpu.reciprocal %92 {approx = true} : vector<1x128xf32> -> vector<1x128xf32>
    %94 = vector.broadcast %82 : vector<1x128xf32> to vector<64x128xf32>
    %95 = arith.subf %78, %94 : vector<64x128xf32>
    %96 = vector.broadcast %93 : vector<1x128xf32> to vector<64x128xf32>
    %97 = arith.mulf %95, %96 : vector<64x128xf32>
    %c0_41 = arith.constant 0 : index
    %c0_42 = arith.constant 0 : index
    %98 = vector.load %arg9[%c0_41, %c0_42] : memref<128x128xf32, #tpu.memory_space<vmem>>, vector<128x128xf32>
    %c0_43 = arith.constant 0 : index
    %c0_44 = arith.constant 0 : index
    %99 = vector.load %arg10[%c0_43, %c0_44] : memref<1x128xf32, #tpu.memory_space<vmem>>, vector<1x128xf32>
    %100 = arith.truncf %97 : vector<64x128xf32> to vector<64x128xbf16>
    %cst_45 = arith.constant dense<0.000000e+00> : vector<64x128xf32>
    %101 = tpu.matmul %0, %100, %cst_45 {dimension_numbers = #tpu.dot_dimension_numbers<[1], [0], [0], [1], [0, 0, 1, 1], [], []>} : vector<64x64xbf16>, vector<64x128xbf16>, vector<64x128xf32> -> vector<64x128xf32>
    %cst_46 = arith.constant dense<0.000000e+00> : vector<64x128xf32>
    %102 = tpu.matmul %101, %98, %cst_46 {dimension_numbers = #tpu.dot_dimension_numbers<[1], [0], [0], [1], [0, 0, 1, 1], [], []>} : vector<64x128xf32>, vector<128x128xf32>, vector<64x128xf32> -> vector<64x128xf32>
    %103 = vector.broadcast %99 : vector<1x128xf32> to vector<64x128xf32>
    %104 = arith.addf %102, %103 : vector<64x128xf32>
    %cst_47 = arith.constant 0.000000e+00 : f32
    %105 = vector.broadcast %cst_47 : f32 to vector<64x128xf32>
    %106 = arith.cmpf ogt, %104, %105 : vector<64x128xf32>
    %107 = math.exp %104 : vector<64x128xf32>
    %cst_48 = arith.constant 1.000000e+00 : f32
    %108 = vector.broadcast %cst_48 : f32 to vector<64x128xf32>
    %109 = arith.subf %107, %108 : vector<64x128xf32>
    %110 = arith.select %106, %104, %109 : vector<64x128xi1>, vector<64x128xf32>
    %cst_49 = arith.constant dense<0.000000e+00> : vector<128xf32>
    %111 = vector.multi_reduction <add>, %110, %cst_49 [0] : vector<64x128xf32> to vector<128xf32>
    %112 = vector.shape_cast %111 : vector<128xf32> to vector<1x128xf32>
    %cst_50 = arith.constant 6.400000e+01 : f32
    %113 = vector.broadcast %cst_50 : f32 to vector<1x128xf32>
    %114 = arith.divf %112, %113 : vector<1x128xf32>
    %115 = vector.broadcast %114 : vector<1x128xf32> to vector<64x128xf32>
    %116 = arith.subf %110, %115 : vector<64x128xf32>
    %117 = arith.mulf %116, %116 : vector<64x128xf32>
    %cst_51 = arith.constant dense<0.000000e+00> : vector<128xf32>
    %118 = vector.multi_reduction <add>, %117, %cst_51 [0] : vector<64x128xf32> to vector<128xf32>
    %119 = vector.shape_cast %118 : vector<128xf32> to vector<1x128xf32>
    %cst_52 = arith.constant 0.0158730168 : f32
    %120 = vector.broadcast %cst_52 : f32 to vector<1x128xf32>
    %121 = arith.mulf %119, %120 : vector<1x128xf32>
    %122 = math.sqrt %121 : vector<1x128xf32>
    %cst_53 = arith.constant 9.99999974E-6 : f32
    %123 = vector.broadcast %cst_53 : f32 to vector<1x128xf32>
    %124 = arith.addf %122, %123 : vector<1x128xf32>
    %125 = tpu.reciprocal %124 {approx = true} : vector<1x128xf32> -> vector<1x128xf32>
    %126 = vector.broadcast %114 : vector<1x128xf32> to vector<64x128xf32>
    %127 = arith.subf %110, %126 : vector<64x128xf32>
    %128 = vector.broadcast %125 : vector<1x128xf32> to vector<64x128xf32>
    %129 = arith.mulf %127, %128 : vector<64x128xf32>
    %c0_54 = arith.constant 0 : index
    %c0_55 = arith.constant 0 : index
    %130 = vector.load %arg11[%c0_54, %c0_55] : memref<128x256xf32, #tpu.memory_space<vmem>>, vector<128x256xf32>
    %c0_56 = arith.constant 0 : index
    %c0_57 = arith.constant 0 : index
    %131 = vector.load %arg12[%c0_56, %c0_57] : memref<1x256xf32, #tpu.memory_space<vmem>>, vector<1x256xf32>
    %132 = arith.truncf %129 : vector<64x128xf32> to vector<64x128xbf16>
    %cst_58 = arith.constant dense<0.000000e+00> : vector<64x128xf32>
    %133 = tpu.matmul %0, %132, %cst_58 {dimension_numbers = #tpu.dot_dimension_numbers<[1], [0], [0], [1], [0, 0, 1, 1], [], []>} : vector<64x64xbf16>, vector<64x128xbf16>, vector<64x128xf32> -> vector<64x128xf32>
    %cst_59 = arith.constant dense<0.000000e+00> : vector<64x256xf32>
    %134 = tpu.matmul %133, %130, %cst_59 {dimension_numbers = #tpu.dot_dimension_numbers<[1], [0], [0], [1], [0, 0, 1, 1], [], []>} : vector<64x128xf32>, vector<128x256xf32>, vector<64x256xf32> -> vector<64x256xf32>
    %135 = vector.broadcast %131 : vector<1x256xf32> to vector<64x256xf32>
    %136 = arith.addf %134, %135 : vector<64x256xf32>
    %cst_60 = arith.constant 0.000000e+00 : f32
    %137 = vector.broadcast %cst_60 : f32 to vector<64x256xf32>
    %138 = arith.cmpf ogt, %136, %137 : vector<64x256xf32>
    %139 = math.exp %136 : vector<64x256xf32>
    %cst_61 = arith.constant 1.000000e+00 : f32
    %140 = vector.broadcast %cst_61 : f32 to vector<64x256xf32>
    %141 = arith.subf %139, %140 : vector<64x256xf32>
    %142 = arith.select %138, %136, %141 : vector<64x256xi1>, vector<64x256xf32>
    %cst_62 = arith.constant dense<0.000000e+00> : vector<256xf32>
    %143 = vector.multi_reduction <add>, %142, %cst_62 [0] : vector<64x256xf32> to vector<256xf32>
    %144 = vector.shape_cast %143 : vector<256xf32> to vector<1x256xf32>
    %cst_63 = arith.constant 6.400000e+01 : f32
    %145 = vector.broadcast %cst_63 : f32 to vector<1x256xf32>
    %146 = arith.divf %144, %145 : vector<1x256xf32>
    %147 = vector.broadcast %146 : vector<1x256xf32> to vector<64x256xf32>
    %148 = arith.subf %142, %147 : vector<64x256xf32>
    %149 = arith.mulf %148, %148 : vector<64x256xf32>
    %cst_64 = arith.constant dense<0.000000e+00> : vector<256xf32>
    %150 = vector.multi_reduction <add>, %149, %cst_64 [0] : vector<64x256xf32> to vector<256xf32>
    %151 = vector.shape_cast %150 : vector<256xf32> to vector<1x256xf32>
    %cst_65 = arith.constant 0.0158730168 : f32
    %152 = vector.broadcast %cst_65 : f32 to vector<1x256xf32>
    %153 = arith.mulf %151, %152 : vector<1x256xf32>
    %154 = math.sqrt %153 : vector<1x256xf32>
    %cst_66 = arith.constant 9.99999974E-6 : f32
    %155 = vector.broadcast %cst_66 : f32 to vector<1x256xf32>
    %156 = arith.addf %154, %155 : vector<1x256xf32>
    %157 = tpu.reciprocal %156 {approx = true} : vector<1x256xf32> -> vector<1x256xf32>
    %158 = vector.broadcast %146 : vector<1x256xf32> to vector<64x256xf32>
    %159 = arith.subf %142, %158 : vector<64x256xf32>
    %160 = vector.broadcast %157 : vector<1x256xf32> to vector<64x256xf32>
    %161 = arith.mulf %159, %160 : vector<64x256xf32>
    %c0_67 = arith.constant 0 : index
    %c0_68 = arith.constant 0 : index
    %162 = vector.load %arg13[%c0_67, %c0_68] : memref<256x128xf32, #tpu.memory_space<vmem>>, vector<256x128xf32>
    %c0_69 = arith.constant 0 : index
    %c0_70 = arith.constant 0 : index
    %163 = vector.load %arg14[%c0_69, %c0_70] : memref<1x128xf32, #tpu.memory_space<vmem>>, vector<1x128xf32>
    %cst_71 = arith.constant dense<0.000000e+00> : vector<64x128xf32>
    %164 = tpu.matmul %161, %162, %cst_71 {dimension_numbers = #tpu.dot_dimension_numbers<[1], [0], [0], [1], [0, 0, 1, 1], [], []>} : vector<64x256xf32>, vector<256x128xf32>, vector<64x128xf32> -> vector<64x128xf32>
    %165 = arith.truncf %164 : vector<64x128xf32> to vector<64x128xbf16>
    %cst_72 = arith.constant dense<0.000000e+00> : vector<64x128xf32>
    %166 = tpu.matmul %0, %165, %cst_72 {dimension_numbers = #tpu.dot_dimension_numbers<[1], [0], [0], [1], [0, 0, 1, 1], [], []>} : vector<64x64xbf16>, vector<64x128xbf16>, vector<64x128xf32> -> vector<64x128xf32>
    %167 = vector.broadcast %163 : vector<1x128xf32> to vector<64x128xf32>
    %168 = arith.addf %166, %167 : vector<64x128xf32>
    %c0_73 = arith.constant 0 : index
    %c0_74 = arith.constant 0 : index
    %169 = vector.load %arg15[%c0_73, %c0_74] : memref<64x128xf32, #tpu.memory_space<vmem>>, vector<64x128xf32>
    tpu.vector_store %arg15[%c0_73, %c0_74], %168 {strides = array<i32>} : memref<64x128xf32, #tpu.memory_space<vmem>>, vector<64x128xf32>,
    return
  }
  func.func @transform_0(%arg0: i32) -> (i32, i32) {
    %c0_i32 = arith.constant 0 : i32
    %c0_i32_0 = arith.constant 0 : i32
    %c0_i32_1 = arith.constant 0 : i32
    return %c0_i32, %c0_i32_0 : i32, i32
  }
  func.func @transform_1(%arg0: i32) -> (i32, i32) {
    %c0_i32 = arith.constant 0 : i32
    %c0_i32_0 = arith.constant 0 : i32
    %c0_i32_1 = arith.constant 0 : i32
    return %c0_i32, %c0_i32_0 : i32, i32
  }
  func.func @transform_2(%arg0: i32) -> (i32, i32) {
    %c0_i32 = arith.constant 0 : i32
    %c0_i32_0 = arith.constant 0 : i32
    %c0_i32_1 = arith.constant 0 : i32
    return %c0_i32, %c0_i32_0 : i32, i32
  }
  func.func @transform_3(%arg0: i32) -> (i32, i32) {
    %c0_i32 = arith.constant 0 : i32
    %c0_i32_0 = arith.constant 0 : i32
    %c0_i32_1 = arith.constant 0 : i32
    return %c0_i32, %c0_i32_0 : i32, i32
  }
  func.func @transform_4(%arg0: i32) -> (i32, i32) {
    %c0_i32 = arith.constant 0 : i32
    %c0_i32_0 = arith.constant 0 : i32
    %c0_i32_1 = arith.constant 0 : i32
    return %c0_i32, %c0_i32_0 : i32, i32
  }
  func.func @transform_5(%arg0: i32) -> (i32, i32) {
    %c0_i32 = arith.constant 0 : i32
    %c0_i32_0 = arith.constant 0 : i32
    %c0_i32_1 = arith.constant 0 : i32
    return %c0_i32, %c0_i32_0 : i32, i32
  }
  func.func @transform_6(%arg0: i32) -> (i32, i32) {
    %c0_i32 = arith.constant 0 : i32
    %c0_i32_0 = arith.constant 0 : i32
    %c0_i32_1 = arith.constant 0 : i32
    return %c0_i32, %c0_i32_0 : i32, i32
  }
  func.func @transform_7(%arg0: i32) -> (i32, i32) {
    %c0_i32 = arith.constant 0 : i32
    %c0_i32_0 = arith.constant 0 : i32
    %c0_i32_1 = arith.constant 0 : i32
    return %c0_i32, %c0_i32_0 : i32, i32
  }
  func.func @transform_8(%arg0: i32) -> (i32, i32) {
    %c0_i32 = arith.constant 0 : i32
    %c0_i32_0 = arith.constant 0 : i32
    %c0_i32_1 = arith.constant 0 : i32
    return %c0_i32, %c0_i32_0 : i32, i32
  }
  func.func @transform_9(%arg0: i32) -> (i32, i32) {
    %c0_i32 = arith.constant 0 : i32
    %c0_i32_0 = arith.constant 0 : i32
    %c0_i32_1 = arith.constant 0 : i32
    return %c0_i32, %c0_i32_0 : i32, i32
  }
  func.func @transform_10(%arg0: i32) -> (i32, i32) {
    %c0_i32 = arith.constant 0 : i32
    %c0_i32_0 = arith.constant 0 : i32
    %c0_i32_1 = arith.constant 0 : i32
    return %c0_i32, %c0_i32_0 : i32, i32
  }
  func.func @transform_11(%arg0: i32) -> (i32, i32) {
    %c0_i32 = arith.constant 0 : i32
    %c0_i32_0 = arith.constant 0 : i32
    %c0_i32_1 = arith.constant 0 : i32
    return %c0_i32, %c0_i32_0 : i32, i32
  }
  func.func @transform_12(%arg0: i32) -> (i32, i32) {
    %c0_i32 = arith.constant 0 : i32
    %c0_i32_0 = arith.constant 0 : i32
    %c0_i32_1 = arith.constant 0 : i32
    return %c0_i32, %c0_i32_0 : i32, i32
  }
  func.func @transform_13(%arg0: i32) -> (i32, i32) {
    %c0_i32 = arith.constant 0 : i32
    %c0_i32_0 = arith.constant 0 : i32
    %c0_i32_1 = arith.constant 0 : i32
    return %c0_i32, %c0_i32_0 : i32, i32
  }
  func.func @transform_14(%arg0: i32) -> (i32, i32) {
    %c0_i32 = arith.constant 0 : i32
    %c0_i32_0 = arith.constant 0 : i32
    %c0_i32_1 = arith.constant 0 : i32
    return %c0_i32, %c0_i32_0 : i32, i32
  }
}

</mosaic_0001>

<llo_original>
// kernel: tpu_custom_call.1
$region0: #{tpu_custom_call.1}
  #allocation0 [shape = 'u32[]', space=smem, size = 0x4, offset = 0x4, fixed_abs, tag = 'smem constant byte address 0x4 - core index']
  #allocation1 [shape = 'u32[144,128]{1,0:T(1,128)}', space=vmem, size = 0x12000, scoped, tag = 'internal scratch']
  %s0 = inlined_call_operand.hbm [shape: bf16[64,64], index: 0, kind: input, shape index: {}]
  %s1 = inlined_call_operand.hbm [shape: f32[64,128], index: 1, kind: input, shape index: {}]
  %s2 = inlined_call_operand.hbm [shape: f32[128,128], index: 2, kind: input, shape index: {}]
  %s3 = inlined_call_operand.vmem [shape: f32[1,128], index: 3, kind: input, shape index: {}]
  %s4 = inlined_call_operand.hbm [shape: f32[128,128], index: 4, kind: input, shape index: {}]
  %s5 = inlined_call_operand.vmem [shape: f32[1,128], index: 5, kind: input, shape index: {}]
  %s6 = inlined_call_operand.hbm [shape: f32[128,128], index: 6, kind: input, shape index: {}]
  %s7 = inlined_call_operand.vmem [shape: f32[1,128], index: 7, kind: input, shape index: {}]
  %s8 = inlined_call_operand.hbm [shape: f32[128,128], index: 8, kind: input, shape index: {}]
  %s9 = inlined_call_operand.vmem [shape: f32[1,128], index: 9, kind: input, shape index: {}]
  %s10 = inlined_call_operand.hbm [shape: f32[128,256], index: 10, kind: input, shape index: {}]
  %s11 = inlined_call_operand.vmem [shape: f32[1,256], index: 11, kind: input, shape index: {}]
  %s12 = inlined_call_operand.hbm [shape: f32[256,128], index: 12, kind: input, shape index: {}]
  %s13 = inlined_call_operand.vmem [shape: f32[1,128], index: 13, kind: input, shape index: {}]
  %s14 = inlined_call_operand.hbm [shape: f32[64,128], index: 14, kind: output, shape index: {}]
  %s15 = sld [smem:[#allocation0]]
  $region98: #{tpu_custom_call.1} parent=0
    _
  %s17 = ssub.s32 1, %s15
  %s18 = scalar_select 0, %s17, %s15
  $region1: #{tpu_custom_call.1} parent=0
    #allocation2 [shape = 'u8[16384]{0}', space=vmem, size = 0x4000, scoped, tag = 'input window, operand 0, single buffered']
    #allocation3 [shape = 's32[1]{0}', space=sflag, size = 0x4, scoped, tag = 'scoped memory for tpu_custom_call.1']
    #allocation4 [shape = 's32[1]{0}', space=sflag, size = 0x4, scoped, tag = 'scoped memory for tpu_custom_call.1']
    #allocation5 [shape = 'u8[32768]{0}', space=vmem, size = 0x8000, scoped, tag = 'input window, operand 1, single buffered']
    #allocation6 [shape = 's32[1]{0}', space=sflag, size = 0x4, scoped, tag = 'scoped memory for tpu_custom_call.1']
    #allocation7 [shape = 'u8[65536]{0}', space=vmem, size = 0x10000, scoped, tag = 'input window, operand 2, single buffered']
    #allocation8 [shape = 'u8[65536]{0}', space=vmem, size = 0x10000, scoped, tag = 'input window, operand 4, single buffered']
    #allocation9 [shape = 's32[1]{0}', space=sflag, size = 0x4, scoped, tag = 'scoped memory for tpu_custom_call.1']
    #allocation10 [shape = 'u8[65536]{0}', space=vmem, size = 0x10000, scoped, tag = 'input window, operand 6, single buffered']
    #allocation11 [shape = 'u8[65536]{0}', space=vmem, size = 0x10000, scoped, tag = 'input window, operand 8, single buffered']
    #allocation12 [shape = 's32[1]{0}', space=sflag, size = 0x4, scoped, tag = 'scoped memory for tpu_custom_call.1']
    #allocation13 [shape = 'u8[131072]{0}', space=vmem, size = 0x20000, scoped, tag = 'input window, operand 10, single buffered']
    #allocation14 [shape = 'u8[131072]{0}', space=vmem, size = 0x20000, scoped, tag = 'input window, operand 12, single buffered']
    #allocation15 [shape = 's32[1]{0}', space=sflag, size = 0x4, scoped, tag = 'scoped memory for tpu_custom_call.1']
    #allocation16 [shape = 'u8[32768]{0}', space=vmem, size = 0x8000, scoped, tag = 'output window, operand 0, single buffered']
    %19 = vsyncpa [#allocation3], 0
    %20 = vsyncpa [#allocation6], 0
    %21 = vsyncpa [#allocation9], 0
    %22 = vsyncpa [#allocation12], 0
    %23 = vsyncpa [#allocation15], 0
    %24 = vsyncpa [#allocation4], 0
    // Predicated region
    $region2: #{tpu_custom_call.1} parent=1 // pred_check
      _
    $region3: #{tpu_custom_call.1} parent=1 // pred_check_branch
      %26 = sbr.rel (0) target = $region5
    $region4: #{tpu_custom_call.1} parent=1 // pred_region
      %s28 = ssub.s32 512, 512
      %29 = vsyncadd [#allocation3], %s28
      %s30 = sshll.u32 [#allocation2], 4
      %s31 = int_to_ptr.vmem [resolvable:$true] %s30
      %36 = dma.hbm_to_vmem [thread:$0]  %s0, 512, %s31, [#allocation3], 64, 64, 4
    $region5: #{tpu_custom_call.1} parent=1 // pred_fallthru
      _
    // Predicated region
    $region6: #{tpu_custom_call.1} parent=1 // pred_check
      _
    $region7: #{tpu_custom_call.1} parent=1 // pred_check_branch
      %38 = sbr.rel (0) target = $region9
    $region8: #{tpu_custom_call.1} parent=1 // pred_region
      %s40 = ssub.s32 1024, 1024
      %41 = vsyncadd [#allocation6], %s40
      %s42 = sshll.u32 [#allocation5], 4
      %s43 = int_to_ptr.vmem [resolvable:$true] %s42
      %48 = dma.hbm_to_vmem [thread:$0]  %s1, 1024, %s43, [#allocation6], 128, 128, 8
    $region9: #{tpu_custom_call.1} parent=1 // pred_fallthru
      _
    // Predicated region
    $region10: #{tpu_custom_call.1} parent=1 // pred_check
      _
    $region11: #{tpu_custom_call.1} parent=1 // pred_check_branch
      %50 = sbr.rel (0) target = $region13
    $region12: #{tpu_custom_call.1} parent=1 // pred_region
      %s52 = ssub.s32 2048, 2048
      %53 = vsyncadd [#allocation6], %s52
      %s54 = sshll.u32 [#allocation7], 4
      %s55 = int_to_ptr.vmem [resolvable:$true] %s54
      %60 = dma.hbm_to_vmem [thread:$0]  %s2, 2048, %s55, [#allocation6], 128, 128, 8
    $region13: #{tpu_custom_call.1} parent=1 // pred_fallthru
      _
    // Predicated region
    $region14: #{tpu_custom_call.1} parent=1 // pred_check
      _
    $region15: #{tpu_custom_call.1} parent=1 // pred_check_branch
      %62 = sbr.rel (0) target = $region17
    $region16: #{tpu_custom_call.1} parent=1 // pred_region
      _
    $region17: #{tpu_custom_call.1} parent=1 // pred_fallthru
      _
    // Predicated region
    $region18: #{tpu_custom_call.1} parent=1 // pred_check
      _
    $region19: #{tpu_custom_call.1} parent=1 // pred_check_branch
      %64 = sbr.rel (0) target = $region21
    $region20: #{tpu_custom_call.1} parent=1 // pred_region
      %s66 = ssub.s32 2048, 2048
      %67 = vsyncadd [#allocation9], %s66
      %s68 = sshll.u32 [#allocation8], 4
      %s69 = int_to_ptr.vmem [resolvable:$true] %s68
      %74 = dma.hbm_to_vmem [thread:$0]  %s4, 2048, %s69, [#allocation9], 128, 128, 8
    $region21: #{tpu_custom_call.1} parent=1 // pred_fallthru
      _
    // Predicated region
    $region22: #{tpu_custom_call.1} parent=1 // pred_check
      _
    $region23: #{tpu_custom_call.1} parent=1 // pred_check_branch
      %76 = sbr.rel (0) target = $region25
    $region24: #{tpu_custom_call.1} parent=1 // pred_region
      _
    $region25: #{tpu_custom_call.1} parent=1 // pred_fallthru
      _
    // Predicated region
    $region26: #{tpu_custom_call.1} parent=1 // pred_check
      _
    $region27: #{tpu_custom_call.1} parent=1 // pred_check_branch
      %78 = sbr.rel (0) target = $region29
    $region28: #{tpu_custom_call.1} parent=1 // pred_region
      %s80 = ssub.s32 2048, 2048
      %81 = vsyncadd [#allocation9], %s80
      %s82 = sshll.u32 [#allocation10], 4
      %s83 = int_to_ptr.vmem [resolvable:$true] %s82
      %88 = dma.hbm_to_vmem [thread:$0]  %s6, 2048, %s83, [#allocation9], 128, 128, 8
    $region29: #{tpu_custom_call.1} parent=1 // pred_fallthru
      _
    // Predicated region
    $region30: #{tpu_custom_call.1} parent=1 // pred_check
      _
    $region31: #{tpu_custom_call.1} parent=1 // pred_check_branch
      %90 = sbr.rel (0) target = $region33
    $region32: #{tpu_custom_call.1} parent=1 // pred_region
      _
    $region33: #{tpu_custom_call.1} parent=1 // pred_fallthru
      _
    // Predicated region
    $region34: #{tpu_custom_call.1} parent=1 // pred_check
      _
    $region35: #{tpu_custom_call.1} parent=1 // pred_check_branch
      %92 = sbr.rel (0) target = $region37
    $region36: #{tpu_custom_call.1} parent=1 // pred_region
      %s94 = ssub.s32 2048, 2048
      %95 = vsyncadd [#allocation12], %s94
      %s96 = sshll.u32 [#allocation11], 4
      %s97 = int_to_ptr.vmem [resolvable:$true] %s96
      %102 = dma.hbm_to_vmem [thread:$0]  %s8, 2048, %s97, [#allocation12], 128, 128, 8
    $region37: #{tpu_custom_call.1} parent=1 // pred_fallthru
      _
    // Predicated region
    $region38: #{tpu_custom_call.1} parent=1 // pred_check
      _
    $region39: #{tpu_custom_call.1} parent=1 // pred_check_branch
      %104 = sbr.rel (0) target = $region41
    $region40: #{tpu_custom_call.1} parent=1 // pred_region
      _
    $region41: #{tpu_custom_call.1} parent=1 // pred_fallthru
      _
    // Predicated region
    $region42: #{tpu_custom_call.1} parent=1 // pred_check
      _
    $region43: #{tpu_custom_call.1} parent=1 // pred_check_branch
      %106 = sbr.rel (0) target = $region45
    $region44: #{tpu_custom_call.1} parent=1 // pred_region
      %s108 = ssub.s32 4096, 4096
      %109 = vsyncadd [#allocation12], %s108
      %s110 = sshll.u32 [#allocation13], 4
      %s111 = int_to_ptr.vmem [resolvable:$true] %s110
      %116 = dma.hbm_to_vmem [thread:$0]  %s10, 4096, %s111, [#allocation12], 256, 256, 16
    $region45: #{tpu_custom_call.1} parent=1 // pred_fallthru
      _
    // Predicated region
    $region46: #{tpu_custom_call.1} parent=1 // pred_check
      _
    $region47: #{tpu_custom_call.1} parent=1 // pred_check_branch
      %118 = sbr.rel (0) target = $region49
    $region48: #{tpu_custom_call.1} parent=1 // pred_region
      _
    $region49: #{tpu_custom_call.1} parent=1 // pred_fallthru
      _
    // Predicated region
    $region50: #{tpu_custom_call.1} parent=1 // pred_check
      _
    $region51: #{tpu_custom_call.1} parent=1 // pred_check_branch
      %120 = sbr.rel (0) target = $region53
    $region52: #{tpu_custom_call.1} parent=1 // pred_region
      %s122 = ssub.s32 4096, 4096
      %123 = vsyncadd [#allocation15], %s122
      %s124 = sshll.u32 [#allocation14], 4
      %s125 = int_to_ptr.vmem [resolvable:$true] %s124
      %130 = dma.hbm_to_vmem [thread:$0]  %s12, 4096, %s125, [#allocation15], 128, 128, 8
    $region53: #{tpu_custom_call.1} parent=1 // pred_fallthru
      _
    // Predicated region
    $region54: #{tpu_custom_call.1} parent=1 // pred_check
      _
    $region55: #{tpu_custom_call.1} parent=1 // pred_check_branch
      %132 = sbr.rel (0) target = $region57
    $region56: #{tpu_custom_call.1} parent=1 // pred_region
      _
    $region57: #{tpu_custom_call.1} parent=1 // pred_fallthru
      _
    // Predicated region
    $region58: #{tpu_custom_call.1} parent=1 // pred_check
      _
    $region59: #{tpu_custom_call.1} parent=1 // pred_check_branch
      %134 = sbr.rel (0) target = $region61
    $region60: #{tpu_custom_call.1} parent=1 // pred_region
      %135 = dma.done [#allocation3], 512
    $region61: #{tpu_custom_call.1} parent=1 // pred_fallthru
      _
    // Predicated region
    $region62: #{tpu_custom_call.1} parent=1 // pred_check
      _
    $region63: #{tpu_custom_call.1} parent=1 // pred_check_branch
      %137 = sbr.rel (0) target = $region65
    $region64: #{tpu_custom_call.1} parent=1 // pred_region
      %138 = dma.done [#allocation6], 1024
    $region65: #{tpu_custom_call.1} parent=1 // pred_fallthru
      _
    // Predicated region
    $region66: #{tpu_custom_call.1} parent=1 // pred_check
      _
    $region67: #{tpu_custom_call.1} parent=1 // pred_check_branch
      %140 = sbr.rel (0) target = $region69
    $region68: #{tpu_custom_call.1} parent=1 // pred_region
      %141 = dma.done [#allocation6], 2048
    $region69: #{tpu_custom_call.1} parent=1 // pred_fallthru
      _
    // Predicated region
    $region70: #{tpu_custom_call.1} parent=1 // pred_check
      _
    $region71: #{tpu_custom_call.1} parent=1 // pred_check_branch
      %143 = sbr.rel (0) target = $region73
    $region72: #{tpu_custom_call.1} parent=1 // pred_region
      %144 = dma.done [#allocation9], 2048
    $region73: #{tpu_custom_call.1} parent=1 // pred_fallthru
      _
    // Predicated region
    $region74: #{tpu_custom_call.1} parent=1 // pred_check
      _
    $region75: #{tpu_custom_call.1} parent=1 // pred_check_branch
      %146 = sbr.rel (0) target = $region77
    $region76: #{tpu_custom_call.1} parent=1 // pred_region
      %147 = dma.done [#allocation9], 2048
    $region77: #{tpu_custom_call.1} parent=1 // pred_fallthru
      _
    // Predicated region
    $region78: #{tpu_custom_call.1} parent=1 // pred_check
      _
    $region79: #{tpu_custom_call.1} parent=1 // pred_check_branch
      %149 = sbr.rel (0) target = $region81
    $region80: #{tpu_custom_call.1} parent=1 // pred_region
      %150 = dma.done [#allocation12], 2048
    $region81: #{tpu_custom_call.1} parent=1 // pred_fallthru
      _
    // Predicated region
    $region82: #{tpu_custom_call.1} parent=1 // pred_check
      _
    $region83: #{tpu_custom_call.1} parent=1 // pred_check_branch
      %152 = sbr.rel (0) target = $region85
    $region84: #{tpu_custom_call.1} parent=1 // pred_region
      %153 = dma.done [#allocation12], 4096
    $region85: #{tpu_custom_call.1} parent=1 // pred_fallthru
      _
    // Predicated region
    $region86: #{tpu_custom_call.1} parent=1 // pred_check
      _
    $region87: #{tpu_custom_call.1} parent=1 // pred_check_branch
      %155 = sbr.rel (0) target = $region89
    $region88: #{tpu_custom_call.1} parent=1 // pred_region
      %156 = dma.done [#allocation15], 4096
    $region89: #{tpu_custom_call.1} parent=1 // pred_fallthru
      _
    %v158 = vld [vmem:[#allocation2] sm:$0xf]
    %v159 = vld [vmem:[#allocation2 + $0x4] sm:$0xf]
    %v160 = vld [vmem:[#allocation2 + $0x8] sm:$0xf]
    %v161 = vld [vmem:[#allocation2 + $0xc] sm:$0xf]
    %v162 = vld [vmem:[#allocation2 + $0x10] sm:$0xf]
    %v163 = vld [vmem:[#allocation2 + $0x14] sm:$0xf]
    %v164 = vld [vmem:[#allocation2 + $0x18] sm:$0xf]
    %v165 = vld [vmem:[#allocation2 + $0x1c] sm:$0xf]
    %v166 = vld [vmem:[#allocation5] sm:$0xff]
    %v167 = vld [vmem:[#allocation5 + $0x8] sm:$0xff]
    %v168 = vld [vmem:[#allocation5 + $0x10] sm:$0xff]
    %v169 = vld [vmem:[#allocation5 + $0x18] sm:$0xff]
    %v170 = vld [vmem:[#allocation5 + $0x20] sm:$0xff]
    %v171 = vld [vmem:[#allocation5 + $0x28] sm:$0xff]
    %v172 = vld [vmem:[#allocation5 + $0x30] sm:$0xff]
    %v173 = vld [vmem:[#allocation5 + $0x38] sm:$0xff]
    %v174 = vld [vmem:[#allocation7] sm:$0xff]
    %v175 = vld [vmem:[#allocation7 + $0x8] sm:$0xff]
    %v176 = vld [vmem:[#allocation7 + $0x10] sm:$0xff]
    %v177 = vld [vmem:[#allocation7 + $0x18] sm:$0xff]
    %v178 = vld [vmem:[#allocation7 + $0x20] sm:$0xff]
    %v179 = vld [vmem:[#allocation7 + $0x28] sm:$0xff]
    %v180 = vld [vmem:[#allocation7 + $0x30] sm:$0xff]
    %v181 = vld [vmem:[#allocation7 + $0x38] sm:$0xff]
    %v182 = vld [vmem:[#allocation7 + $0x40] sm:$0xff]
    %v183 = vld [vmem:[#allocation7 + $0x48] sm:$0xff]
    %v184 = vld [vmem:[#allocation7 + $0x50] sm:$0xff]
    %v185 = vld [vmem:[#allocation7 + $0x58] sm:$0xff]
    %v186 = vld [vmem:[#allocation7 + $0x60] sm:$0xff]
    %v187 = vld [vmem:[#allocation7 + $0x68] sm:$0xff]
    %v188 = vld [vmem:[#allocation7 + $0x70] sm:$0xff]
    %v189 = vld [vmem:[#allocation7 + $0x78] sm:$0xff]
    %v190 = vld [vmem:[%s3] sm:$0x1]
    %v191 = vpack.c.bf16 %v167, %v166
    %v192 = vpack.c.bf16 %v169, %v168
    %v193 = vpack.c.bf16 %v171, %v170
    %v194 = vpack.c.bf16 %v173, %v172
    %v203 = vunpack.c.l.b16 %v158
    %v204 = vunpack.c.l.b16 %v159
    %v205 = vunpack.c.l.b16 %v160
    %v206 = vunpack.c.l.b16 %v161
    %v207 = vunpack.c.l.b16 %v162
    %v208 = vunpack.c.l.b16 %v163
    %v209 = vunpack.c.l.b16 %v164
    %v210 = vunpack.c.l.b16 %v165
    %v211 = vpack.c.b16 %v204, %v203
    %v212 = vpack.c.b16 %v206, %v205
    %v213 = vpack.c.b16 %v208, %v207
    %v214 = vpack.c.b16 %v210, %v209
    %vm215 = vcmask 523264
    %v217 = vsel %vm215, %v211, 0
    %v220 = vsel %vm215, %v212, 0
    %v223 = vsel %vm215, %v213, 0
    %v226 = vsel %vm215, %v214, 0
    %228 = vmatprep.subr.bf16.mxu0 0
    %229 = vmatpush1.bf16.msra.mxu0 %v191
    %230 = vmatprep.subr.bf16.mxu0 0
    %231 = vmatpush1.bf16.msra.mxu0 %v192
    %232 = vmatprep.subr.bf16.mxu0 0
    %233 = vmatpush1.bf16.msra.mxu0 %v193
    %234 = vmatprep.subr.bf16.mxu0 0
    %235 = vmatpush1.bf16.msra.mxu0 %v194
    %236 = vmatprep.subr.bf16.mxu0 0
    %237 = vmatpush1.bf16.msra.mxu0 0
    %238 = vmatprep.subr.bf16.mxu0 0
    %239 = vmatpush1.bf16.msra.mxu0 0
    %240 = vmatprep.subr.bf16.mxu0 0
    %241 = vmatpush1.bf16.msra.mxu0 0
    %242 = vmatprep.subr.bf16.mxu0 0
    %243 = vmatpush1.bf16.msra.mxu0 0
    %244 = vmatprep.subr.bf16.mxu0 0
    %245 = vmatpush1.bf16.msra.mxu0 0
    %246 = vmatprep.subr.bf16.mxu0 0
    %247 = vmatpush1.bf16.msra.mxu0 0
    %248 = vmatprep.subr.bf16.mxu0 0
    %249 = vmatpush1.bf16.msra.mxu0 0
    %250 = vmatprep.subr.bf16.mxu0 0
    %251 = vmatpush1.bf16.msra.mxu0 0
    %252 = vmatprep.subr.bf16.mxu0 0
    %253 = vmatpush1.bf16.msra.mxu0 0
    %254 = vmatprep.subr.bf16.mxu0 0
    %255 = vmatpush1.bf16.msra.mxu0 0
    %256 = vmatprep.subr.bf16.mxu0 0
    %257 = vmatpush1.bf16.msra.mxu0 0
    %258 = vmatprep.subr.bf16.mxu0 0
    %259 = vmatpush1.bf16.msra.mxu0 0
    %260 = vmatprep.mubr.bf16.mxu0 0
    %261 = vmatmul.mubr.bf16.gmra.mrb[0].mxu0 %v217
    %v262 = vpop.f32.mrb[0].mxu0
    %v263 = vadd.f32 0.0, %v262
    %v264 = vpop.f32.mrb[0].mxu0
    %v265 = vpop.f32.mrb[0].mxu0
    %v266 = vadd.f32 0.0, %v265
    %v267 = vpop.f32.mrb[0].mxu0
    %268 = vmatprep.mubr.bf16.mxu0 0
    %269 = vmatmul.mubr.bf16.gmra.mrb[0].mxu0 %v220
    %v270 = vpop.f32.mrb[0].mxu0
    %v271 = vadd.f32 0.0, %v270
    %v272 = vpop.f32.mrb[0].mxu0
    %v273 = vpop.f32.mrb[0].mxu0
    %v274 = vadd.f32 0.0, %v273
    %v275 = vpop.f32.mrb[0].mxu0
    %276 = vmatprep.mubr.bf16.mxu0 0
    %277 = vmatmul.mubr.bf16.gmra.mrb[0].mxu0 %v223
    %v278 = vpop.f32.mrb[0].mxu0
    %v279 = vadd.f32 0.0, %v278
    %v280 = vpop.f32.mrb[0].mxu0
    %v281 = vpop.f32.mrb[0].mxu0
    %v282 = vadd.f32 0.0, %v281
    %v283 = vpop.f32.mrb[0].mxu0
    %284 = vmatprep.mubr.bf16.mxu0 0
    %285 = vmatmul.mubr.bf16.gmra.mrb[0].mxu0 %v226
    %v286 = vpop.f32.mrb[0].mxu0
    %v287 = vadd.f32 0.0, %v286
    %v288 = vpop.f32.mrb[0].mxu0
    %v289 = vpop.f32.mrb[0].mxu0
    %v290 = vadd.f32 0.0, %v289
    %v291 = vpop.f32.mrb[0].mxu0
    %292 = vdwg.mxu0
    %v294 = vlaneseq
    %v295 = vshrl.u32 %v294, 7
    %v296 = vsub.s32 0, %v295
    %v297 = vrot.slane %v190, %v296
    %299 = vmatprep.subr.mxu0 0.0
    %300 = vmatpush1.msra.mxu0 %v174
    %301 = vmatprep.subr.mxu0 0.0
    %302 = vmatpush1.msra.mxu0 %v175
    %303 = vmatprep.subr.mxu0 0.0
    %304 = vmatpush1.msra.mxu0 %v176
    %305 = vmatprep.subr.mxu0 0.0
    %306 = vmatpush1.msra.mxu0 %v177
    %307 = vmatprep.subr.mxu0 0.0
    %308 = vmatpush1.msra.mxu0 %v178
    %309 = vmatprep.subr.mxu0 0.0
    %310 = vmatpush1.msra.mxu0 %v179
    %311 = vmatprep.subr.mxu0 0.0
    %312 = vmatpush1.msra.mxu0 %v180
    %313 = vmatprep.subr.mxu0 0.0
    %314 = vmatpush1.msra.mxu0 %v181
    %315 = vmatprep.subr.mxu0 0.0
    %316 = vmatpush1.msra.mxu0 %v182
    %317 = vmatprep.subr.mxu0 0.0
    %318 = vmatpush1.msra.mxu0 %v183
    %319 = vmatprep.subr.mxu0 0.0
    %320 = vmatpush1.msra.mxu0 %v184
    %321 = vmatprep.subr.mxu0 0.0
    %322 = vmatpush1.msra.mxu0 %v185
    %323 = vmatprep.subr.mxu0 0.0
    %324 = vmatpush1.msra.mxu0 %v186
    %325 = vmatprep.subr.mxu0 0.0
    %326 = vmatpush1.msra.mxu0 %v187
    %327 = vmatprep.subr.mxu0 0.0
    %328 = vmatpush1.msra.mxu0 %v188
    %329 = vmatprep.subr.mxu0 0.0
    %330 = vmatpush1.msra.mxu0 %v189
    %331 = vmatprep.subr.mxu0 0.0
    %332 = vmatpush1.msra.mxu0 0.0
    %333 = vmatprep.subr.mxu0 0.0
    %334 = vmatpush1.msra.mxu0 0.0
    %335 = vmatprep.subr.mxu0 0.0
    %336 = vmatpush1.msra.mxu0 0.0
    %337 = vmatprep.subr.mxu0 0.0
    %338 = vmatpush1.msra.mxu0 0.0
    %339 = vmatprep.subr.mxu0 0.0
    %340 = vmatpush1.msra.mxu0 0.0
    %341 = vmatprep.subr.mxu0 0.0
    %342 = vmatpush1.msra.mxu0 0.0
    %343 = vmatprep.subr.mxu0 0.0
    %344 = vmatpush1.msra.mxu0 0.0
    %345 = vmatprep.subr.mxu0 0.0
    %346 = vmatpush1.msra.mxu0 0.0
    %347 = vmatprep.subr.mxu0 0.0
    %348 = vmatpush1.msra.mxu0 0.0
    %349 = vmatprep.subr.mxu0 0.0
    %350 = vmatpush1.msra.mxu0 0.0
    %351 = vmatprep.subr.mxu0 0.0
    %352 = vmatpush1.msra.mxu0 0.0
    %353 = vmatprep.subr.mxu0 0.0
    %354 = vmatpush1.msra.mxu0 0.0
    %355 = vmatprep.subr.mxu0 0.0
    %356 = vmatpush1.msra.mxu0 0.0
    %357 = vmatprep.subr.mxu0 0.0
    %358 = vmatpush1.msra.mxu0 0.0
    %359 = vmatprep.subr.mxu0 0.0
    %360 = vmatpush1.msra.mxu0 0.0
    %361 = vmatprep.subr.mxu0 0.0
    %362 = vmatpush1.msra.mxu0 0.0
    %363 = vmatprep.mubr.f32.mxu0 0.0
    %364 = vmatmul.mubr.f32.gmra.mrb[0].mxu0 %v263
    %v365 = vpop.f32.mrb[0].mxu0
    %v366 = vadd.f32 %v297, %v365
    %v367 = vpop.f32.mrb[0].mxu0
    %368 = vmatprep.mubr.f32.mxu0 0.0
    %369 = vmatmul.mubr.f32.gmra.mrb[0].mxu0 %v266
    %v370 = vpop.f32.mrb[0].mxu0
    %v371 = vadd.f32 %v297, %v370
    %v372 = vpop.f32.mrb[0].mxu0
    %373 = vmatprep.mubr.f32.mxu0 0.0
    %374 = vmatmul.mubr.f32.gmra.mrb[0].mxu0 %v271
    %v375 = vpop.f32.mrb[0].mxu0
    %v376 = vadd.f32 %v297, %v375
    %v377 = vpop.f32.mrb[0].mxu0
    %378 = vmatprep.mubr.f32.mxu0 0.0
    %379 = vmatmul.mubr.f32.gmra.mrb[0].mxu0 %v274
    %v380 = vpop.f32.mrb[0].mxu0
    %v381 = vadd.f32 %v297, %v380
    %v382 = vpop.f32.mrb[0].mxu0
    %383 = vmatprep.mubr.f32.mxu0 0.0
    %384 = vmatmul.mubr.f32.gmra.mrb[0].mxu0 %v279
    %v385 = vpop.f32.mrb[0].mxu0
    %v386 = vadd.f32 %v297, %v385
    %v387 = vpop.f32.mrb[0].mxu0
    %388 = vmatprep.mubr.f32.mxu0 0.0
    %389 = vmatmul.mubr.f32.gmra.mrb[0].mxu0 %v282
    %v390 = vpop.f32.mrb[0].mxu0
    %v391 = vadd.f32 %v297, %v390
    %v392 = vpop.f32.mrb[0].mxu0
    %393 = vmatprep.mubr.f32.mxu0 0.0
    %394 = vmatmul.mubr.f32.gmra.mrb[0].mxu0 %v287
    %v395 = vpop.f32.mrb[0].mxu0
    %v396 = vadd.f32 %v297, %v395
    %v397 = vpop.f32.mrb[0].mxu0
    %398 = vmatprep.mubr.f32.mxu0 0.0
    %399 = vmatmul.mubr.f32.gmra.mrb[0].mxu0 %v290
    %v400 = vpop.f32.mrb[0].mxu0
    %v401 = vadd.f32 %v297, %v400
    %v402 = vpop.f32.mrb[0].mxu0
    %403 = vdwg.mxu0
    %vm404 = vcmp.gt.f32.partialorder %v366, 0.0
    %vm405 = vcmp.gt.f32.partialorder %v371, 0.0
    %vm406 = vcmp.gt.f32.partialorder %v376, 0.0
    %vm407 = vcmp.gt.f32.partialorder %v381, 0.0
    %vm408 = vcmp.gt.f32.partialorder %v386, 0.0
    %vm409 = vcmp.gt.f32.partialorder %v391, 0.0
    %vm410 = vcmp.gt.f32.partialorder %v396, 0.0
    %vm411 = vcmp.gt.f32.partialorder %v401, 0.0
    %v412 = vmul.f32 %v366, 1.442695
    %v413 = vpow.pop %v412
    %v414 = vmul.f32 %v371, 1.442695
    %v415 = vpow.pop %v414
    %v416 = vmul.f32 %v376, 1.442695
    %v417 = vpow.pop %v416
    %v418 = vmul.f32 %v381, 1.442695
    %v419 = vpow.pop %v418
    %v420 = vmul.f32 %v386, 1.442695
    %v421 = vpow.pop %v420
    %v422 = vmul.f32 %v391, 1.442695
    %v423 = vpow.pop %v422
    %v424 = vmul.f32 %v396, 1.442695
    %v425 = vpow.pop %v424
    %v426 = vmul.f32 %v401, 1.442695
    %v427 = vpow.pop %v426
    %v428 = vsub.f32 %v413, 1.0
    %v429 = vsub.f32 %v415, 1.0
    %v430 = vsub.f32 %v417, 1.0
    %v431 = vsub.f32 %v419, 1.0
    %v432 = vsub.f32 %v421, 1.0
    %v433 = vsub.f32 %v423, 1.0
    %v434 = vsub.f32 %v425, 1.0
    %v435 = vsub.f32 %v427, 1.0
    %v436 = vsel %vm404, %v366, %v428
    %v437 = vsel %vm405, %v371, %v429
    %v438 = vsel %vm406, %v376, %v430
    %v439 = vsel %vm407, %v381, %v431
    %v440 = vsel %vm408, %v386, %v432
    %v441 = vsel %vm409, %v391, %v433
    %v442 = vsel %vm410, %v396, %v434
    %v443 = vsel %vm411, %v401, %v435
    %v444 = vadd.f32 %v436, %v437
    %v445 = vadd.f32 %v444, %v438
    %v446 = vadd.f32 %v445, %v439
    %v447 = vadd.f32 %v446, %v440
    %v448 = vadd.f32 %v447, %v441
    %v449 = vadd.f32 %v448, %v442
    %v450 = vadd.f32 %v449, %v443
    %v451 = vrot.slane %v450, 4
    %v452 = vadd.f32 %v450, %v451
    %v453 = vrot.slane %v452, 2
    %v454 = vadd.f32 %v452, %v453
    %v455 = vrot.slane %v454, 1
    %v456 = vadd.f32 %v454, %v455
    %v457 = vrcp.pop 64.0
    %v458 = vmul.f32 %v456, %v457
    %v459 = vsub.f32 %v436, %v458
    %v460 = vsub.f32 %v437, %v458
    %v461 = vsub.f32 %v438, %v458
    %v462 = vsub.f32 %v439, %v458
    %v463 = vsub.f32 %v440, %v458
    %v464 = vsub.f32 %v441, %v458
    %v465 = vsub.f32 %v442, %v458
    %v466 = vsub.f32 %v443, %v458
    %v467 = vmul.f32 %v459, %v459
    %v468 = vmul.f32 %v460, %v460
    %v469 = vmul.f32 %v461, %v461
    %v470 = vmul.f32 %v462, %v462
    %v471 = vmul.f32 %v463, %v463
    %v472 = vmul.f32 %v464, %v464
    %v473 = vmul.f32 %v465, %v465
    %v474 = vmul.f32 %v466, %v466
    %v475 = vadd.f32 %v467, %v468
    %v476 = vadd.f32 %v475, %v469
    %v477 = vadd.f32 %v476, %v470
    %v478 = vadd.f32 %v477, %v471
    %v479 = vadd.f32 %v478, %v472
    %v480 = vadd.f32 %v479, %v473
    %v481 = vadd.f32 %v480, %v474
    %v482 = vrot.slane %v481, 4
    %v483 = vadd.f32 %v481, %v482
    %v484 = vrot.slane %v483, 2
    %v485 = vadd.f32 %v483, %v484
    %v486 = vrot.slane %v485, 1
    %v487 = vadd.f32 %v485, %v486
    %v488 = vmul.f32 %v487, 0.015873017
    %v489 = vrsqrt.pop %v488
    %v490 = vmul.f32 %v488, %v489
    %vm491 = vcmp.eq.f32.partialorder %v488, inf
    %v492 = vsel %vm491, %v488, %v490
    %vm493 = vcmp.eq.f32.partialorder %v488, 0.0
    %v494 = vand.u32 %v488, 2147483648
    %v495 = vsel %vm493, %v494, %v492
    %v496 = vadd.f32 %v495, 1e-05
    %v497 = vrcp.pop %v496
    %v498 = vmul.f32 %v459, %v497
    %v499 = vmul.f32 %v460, %v497
    %v500 = vmul.f32 %v461, %v497
    %v501 = vmul.f32 %v462, %v497
    %v502 = vmul.f32 %v463, %v497
    %v503 = vmul.f32 %v464, %v497
    %v504 = vmul.f32 %v465, %v497
    %v505 = vmul.f32 %v466, %v497
    %v506 = vld [vmem:[#allocation8] sm:$0xff]
    %v507 = vld [vmem:[#allocation8 + $0x8] sm:$0xff]
    %v508 = vld [vmem:[#allocation8 + $0x10] sm:$0xff]
    %v509 = vld [vmem:[#allocation8 + $0x18] sm:$0xff]
    %v510 = vld [vmem:[#allocation8 + $0x20] sm:$0xff]
    %v511 = vld [vmem:[#allocation8 + $0x28] sm:$0xff]
    %v512 = vld [vmem:[#allocation8 + $0x30] sm:$0xff]
    %v513 = vld [vmem:[#allocation8 + $0x38] sm:$0xff]
    %v514 = vld [vmem:[#allocation8 + $0x40] sm:$0xff]
    %v515 = vld [vmem:[#allocation8 + $0x48] sm:$0xff]
    %v516 = vld [vmem:[#allocation8 + $0x50] sm:$0xff]
    %v517 = vld [vmem:[#allocation8 + $0x58] sm:$0xff]
    %v518 = vld [vmem:[#allocation8 + $0x60] sm:$0xff]
    %v519 = vld [vmem:[#allocation8 + $0x68] sm:$0xff]
    %v520 = vld [vmem:[#allocation8 + $0x70] sm:$0xff]
    %v521 = vld [vmem:[#allocation8 + $0x78] sm:$0xff]
    %v522 = vld [vmem:[%s5] sm:$0x1]
    %v523 = vpack.c.bf16 %v499, %v498
    %v524 = vpack.c.bf16 %v501, %v500
    %v525 = vpack.c.bf16 %v503, %v502
    %v526 = vpack.c.bf16 %v505, %v504
    %527 = vmatprep.subr.bf16.mxu0 0
    %528 = vmatpush1.bf16.msra.mxu0 %v523
    %529 = vmatprep.subr.bf16.mxu0 0
    %530 = vmatpush1.bf16.msra.mxu0 %v524
    %531 = vmatprep.subr.bf16.mxu0 0
    %532 = vmatpush1.bf16.msra.mxu0 %v525
    %533 = vmatprep.subr.bf16.mxu0 0
    %534 = vmatpush1.bf16.msra.mxu0 %v526
    %535 = vmatprep.subr.bf16.mxu0 0
    %536 = vmatpush1.bf16.msra.mxu0 0
    %537 = vmatprep.subr.bf16.mxu0 0
    %538 = vmatpush1.bf16.msra.mxu0 0
    %539 = vmatprep.subr.bf16.mxu0 0
    %540 = vmatpush1.bf16.msra.mxu0 0
    %541 = vmatprep.subr.bf16.mxu0 0
    %542 = vmatpush1.bf16.msra.mxu0 0
    %543 = vmatprep.subr.bf16.mxu0 0
    %544 = vmatpush1.bf16.msra.mxu0 0
    %545 = vmatprep.subr.bf16.mxu0 0
    %546 = vmatpush1.bf16.msra.mxu0 0
    %547 = vmatprep.subr.bf16.mxu0 0
    %548 = vmatpush1.bf16.msra.mxu0 0
    %549 = vmatprep.subr.bf16.mxu0 0
    %550 = vmatpush1.bf16.msra.mxu0 0
    %551 = vmatprep.subr.bf16.mxu0 0
    %552 = vmatpush1.bf16.msra.mxu0 0
    %553 = vmatprep.subr.bf16.mxu0 0
    %554 = vmatpush1.bf16.msra.mxu0 0
    %555 = vmatprep.subr.bf16.mxu0 0
    %556 = vmatpush1.bf16.msra.mxu0 0
    %557 = vmatprep.subr.bf16.mxu0 0
    %558 = vmatpush1.bf16.msra.mxu0 0
    %559 = vmatprep.mubr.bf16.mxu0 0
    %560 = vmatmul.mubr.bf16.gmra.mrb[0].mxu0 %v217
    %v561 = vpop.f32.mrb[0].mxu0
    %v562 = vadd.f32 0.0, %v561
    %v563 = vpop.f32.mrb[0].mxu0
    %v564 = vpop.f32.mrb[0].mxu0
    %v565 = vadd.f32 0.0, %v564
    %v566 = vpop.f32.mrb[0].mxu0
    %567 = vmatprep.mubr.bf16.mxu0 0
    %568 = vmatmul.mubr.bf16.gmra.mrb[0].mxu0 %v220
    %v569 = vpop.f32.mrb[0].mxu0
    %v570 = vadd.f32 0.0, %v569
    %v571 = vpop.f32.mrb[0].mxu0
    %v572 = vpop.f32.mrb[0].mxu0
    %v573 = vadd.f32 0.0, %v572
    %v574 = vpop.f32.mrb[0].mxu0
    %575 = vmatprep.mubr.bf16.mxu0 0
    %576 = vmatmul.mubr.bf16.gmra.mrb[0].mxu0 %v223
    %v577 = vpop.f32.mrb[0].mxu0
    %v578 = vadd.f32 0.0, %v577
    %v579 = vpop.f32.mrb[0].mxu0
    %v580 = vpop.f32.mrb[0].mxu0
    %v581 = vadd.f32 0.0, %v580
    %v582 = vpop.f32.mrb[0].mxu0
    %583 = vmatprep.mubr.bf16.mxu0 0
    %584 = vmatmul.mubr.bf16.gmra.mrb[0].mxu0 %v226
    %v585 = vpop.f32.mrb[0].mxu0
    %v586 = vadd.f32 0.0, %v585
    %v587 = vpop.f32.mrb[0].mxu0
    %v588 = vpop.f32.mrb[0].mxu0
    %v589 = vadd.f32 0.0, %v588
    %v590 = vpop.f32.mrb[0].mxu0
    %591 = vdwg.mxu0
    %v593 = vlaneseq
    %v594 = vshrl.u32 %v593, 7
    %v595 = vsub.s32 0, %v594
    %v596 = vrot.slane %v522, %v595
    %598 = vmatprep.subr.mxu0 0.0
    %599 = vmatpush1.msra.mxu0 %v506
    %600 = vmatprep.subr.mxu0 0.0
    %601 = vmatpush1.msra.mxu0 %v507
    %602 = vmatprep.subr.mxu0 0.0
    %603 = vmatpush1.msra.mxu0 %v508
    %604 = vmatprep.subr.mxu0 0.0
    %605 = vmatpush1.msra.mxu0 %v509
    %606 = vmatprep.subr.mxu0 0.0
    %607 = vmatpush1.msra.mxu0 %v510
    %608 = vmatprep.subr.mxu0 0.0
    %609 = vmatpush1.msra.mxu0 %v511
    %610 = vmatprep.subr.mxu0 0.0
    %611 = vmatpush1.msra.mxu0 %v512
    %612 = vmatprep.subr.mxu0 0.0
    %613 = vmatpush1.msra.mxu0 %v513
    %614 = vmatprep.subr.mxu0 0.0
    %615 = vmatpush1.msra.mxu0 %v514
    %616 = vmatprep.subr.mxu0 0.0
    %617 = vmatpush1.msra.mxu0 %v515
    %618 = vmatprep.subr.mxu0 0.0
    %619 = vmatpush1.msra.mxu0 %v516
    %620 = vmatprep.subr.mxu0 0.0
    %621 = vmatpush1.msra.mxu0 %v517
    %622 = vmatprep.subr.mxu0 0.0
    %623 = vmatpush1.msra.mxu0 %v518
    %624 = vmatprep.subr.mxu0 0.0
    %625 = vmatpush1.msra.mxu0 %v519
    %626 = vmatprep.subr.mxu0 0.0
    %627 = vmatpush1.msra.mxu0 %v520
    %628 = vmatprep.subr.mxu0 0.0
    %629 = vmatpush1.msra.mxu0 %v521
    %630 = vmatprep.subr.mxu0 0.0
    %631 = vmatpush1.msra.mxu0 0.0
    %632 = vmatprep.subr.mxu0 0.0
    %633 = vmatpush1.msra.mxu0 0.0
    %634 = vmatprep.subr.mxu0 0.0
    %635 = vmatpush1.msra.mxu0 0.0
    %636 = vmatprep.subr.mxu0 0.0
    %637 = vmatpush1.msra.mxu0 0.0
    %638 = vmatprep.subr.mxu0 0.0
    %639 = vmatpush1.msra.mxu0 0.0
    %640 = vmatprep.subr.mxu0 0.0
    %641 = vmatpush1.msra.mxu0 0.0
    %642 = vmatprep.subr.mxu0 0.0
    %643 = vmatpush1.msra.mxu0 0.0
    %644 = vmatprep.subr.mxu0 0.0
    %645 = vmatpush1.msra.mxu0 0.0
    %646 = vmatprep.subr.mxu0 0.0
    %647 = vmatpush1.msra.mxu0 0.0
    %648 = vmatprep.subr.mxu0 0.0
    %649 = vmatpush1.msra.mxu0 0.0
    %650 = vmatprep.subr.mxu0 0.0
    %651 = vmatpush1.msra.mxu0 0.0
    %652 = vmatprep.subr.mxu0 0.0
    %653 = vmatpush1.msra.mxu0 0.0
    %654 = vmatprep.subr.mxu0 0.0
    %655 = vmatpush1.msra.mxu0 0.0
    %656 = vmatprep.subr.mxu0 0.0
    %657 = vmatpush1.msra.mxu0 0.0
    %658 = vmatprep.subr.mxu0 0.0
    %659 = vmatpush1.msra.mxu0 0.0
    %660 = vmatprep.subr.mxu0 0.0
    %661 = vmatpush1.msra.mxu0 0.0
    %662 = vmatprep.mubr.f32.mxu0 0.0
    %663 = vmatmul.mubr.f32.gmra.mrb[0].mxu0 %v562
    %v664 = vpop.f32.mrb[0].mxu0
    %v665 = vadd.f32 %v596, %v664
    %v666 = vpop.f32.mrb[0].mxu0
    %667 = vmatprep.mubr.f32.mxu0 0.0
    %668 = vmatmul.mubr.f32.gmra.mrb[0].mxu0 %v565
    %v669 = vpop.f32.mrb[0].mxu0
    %v670 = vadd.f32 %v596, %v669
    %v671 = vpop.f32.mrb[0].mxu0
    %672 = vmatprep.mubr.f32.mxu0 0.0
    %673 = vmatmul.mubr.f32.gmra.mrb[0].mxu0 %v570
    %v674 = vpop.f32.mrb[0].mxu0
    %v675 = vadd.f32 %v596, %v674
    %v676 = vpop.f32.mrb[0].mxu0
    %677 = vmatprep.mubr.f32.mxu0 0.0
    %678 = vmatmul.mubr.f32.gmra.mrb[0].mxu0 %v573
    %v679 = vpop.f32.mrb[0].mxu0
    %v680 = vadd.f32 %v596, %v679
    %v681 = vpop.f32.mrb[0].mxu0
    %682 = vmatprep.mubr.f32.mxu0 0.0
    %683 = vmatmul.mubr.f32.gmra.mrb[0].mxu0 %v578
    %v684 = vpop.f32.mrb[0].mxu0
    %v685 = vadd.f32 %v596, %v684
    %v686 = vpop.f32.mrb[0].mxu0
    %687 = vmatprep.mubr.f32.mxu0 0.0
    %688 = vmatmul.mubr.f32.gmra.mrb[0].mxu0 %v581
    %v689 = vpop.f32.mrb[0].mxu0
    %v690 = vadd.f32 %v596, %v689
    %v691 = vpop.f32.mrb[0].mxu0
    %692 = vmatprep.mubr.f32.mxu0 0.0
    %693 = vmatmul.mubr.f32.gmra.mrb[0].mxu0 %v586
    %v694 = vpop.f32.mrb[0].mxu0
    %v695 = vadd.f32 %v596, %v694
    %v696 = vpop.f32.mrb[0].mxu0
    %697 = vmatprep.mubr.f32.mxu0 0.0
    %698 = vmatmul.mubr.f32.gmra.mrb[0].mxu0 %v589
    %v699 = vpop.f32.mrb[0].mxu0
    %v700 = vadd.f32 %v596, %v699
    %v701 = vpop.f32.mrb[0].mxu0
    %702 = vdwg.mxu0
    %vm703 = vcmp.gt.f32.partialorder %v665, 0.0
    %vm704 = vcmp.gt.f32.partialorder %v670, 0.0
    %vm705 = vcmp.gt.f32.partialorder %v675, 0.0
    %vm706 = vcmp.gt.f32.partialorder %v680, 0.0
    %vm707 = vcmp.gt.f32.partialorder %v685, 0.0
    %vm708 = vcmp.gt.f32.partialorder %v690, 0.0
    %vm709 = vcmp.gt.f32.partialorder %v695, 0.0
    %vm710 = vcmp.gt.f32.partialorder %v700, 0.0
    %v711 = vmul.f32 %v665, 1.442695
    %v712 = vpow.pop %v711
    %v713 = vmul.f32 %v670, 1.442695
    %v714 = vpow.pop %v713
    %v715 = vmul.f32 %v675, 1.442695
    %v716 = vpow.pop %v715
    %v717 = vmul.f32 %v680, 1.442695
    %v718 = vpow.pop %v717
    %v719 = vmul.f32 %v685, 1.442695
    %v720 = vpow.pop %v719
    %v721 = vmul.f32 %v690, 1.442695
    %v722 = vpow.pop %v721
    %v723 = vmul.f32 %v695, 1.442695
    %v724 = vpow.pop %v723
    %v725 = vmul.f32 %v700, 1.442695
    %v726 = vpow.pop %v725
    %v727 = vsub.f32 %v712, 1.0
    %v728 = vsub.f32 %v714, 1.0
    %v729 = vsub.f32 %v716, 1.0
    %v730 = vsub.f32 %v718, 1.0
    %v731 = vsub.f32 %v720, 1.0
    %v732 = vsub.f32 %v722, 1.0
    %v733 = vsub.f32 %v724, 1.0
    %v734 = vsub.f32 %v726, 1.0
    %v735 = vsel %vm703, %v665, %v727
    %v736 = vsel %vm704, %v670, %v728
    %v737 = vsel %vm705, %v675, %v729
    %v738 = vsel %vm706, %v680, %v730
    %v739 = vsel %vm707, %v685, %v731
    %v740 = vsel %vm708, %v690, %v732
    %v741 = vsel %vm709, %v695, %v733
    %v742 = vsel %vm710, %v700, %v734
    %v743 = vadd.f32 %v735, %v736
    %v744 = vadd.f32 %v743, %v737
    %v745 = vadd.f32 %v744, %v738
    %v746 = vadd.f32 %v745, %v739
    %v747 = vadd.f32 %v746, %v740
    %v748 = vadd.f32 %v747, %v741
    %v749 = vadd.f32 %v748, %v742
    %v750 = vrot.slane %v749, 4
    %v751 = vadd.f32 %v749, %v750
    %v752 = vrot.slane %v751, 2
    %v753 = vadd.f32 %v751, %v752
    %v754 = vrot.slane %v753, 1
    %v755 = vadd.f32 %v753, %v754
    %v756 = vmul.f32 %v755, %v457
    %v757 = vsub.f32 %v735, %v756
    %v758 = vsub.f32 %v736, %v756
    %v759 = vsub.f32 %v737, %v756
    %v760 = vsub.f32 %v738, %v756
    %v761 = vsub.f32 %v739, %v756
    %v762 = vsub.f32 %v740, %v756
    %v763 = vsub.f32 %v741, %v756
    %v764 = vsub.f32 %v742, %v756
    %v765 = vmul.f32 %v757, %v757
    %v766 = vmul.f32 %v758, %v758
    %v767 = vmul.f32 %v759, %v759
    %v768 = vmul.f32 %v760, %v760
    %v769 = vmul.f32 %v761, %v761
    %v770 = vmul.f32 %v762, %v762
    %v771 = vmul.f32 %v763, %v763
    %v772 = vmul.f32 %v764, %v764
    %v773 = vadd.f32 %v765, %v766
    %v774 = vadd.f32 %v773, %v767
    %v775 = vadd.f32 %v774, %v768
    %v776 = vadd.f32 %v775, %v769
    %v777 = vadd.f32 %v776, %v770
    %v778 = vadd.f32 %v777, %v771
    %v779 = vadd.f32 %v778, %v772
    %v780 = vrot.slane %v779, 4
    %v781 = vadd.f32 %v779, %v780
    %v782 = vrot.slane %v781, 2
    %v783 = vadd.f32 %v781, %v782
    %v784 = vrot.slane %v783, 1
    %v785 = vadd.f32 %v783, %v784
    %v786 = vmul.f32 %v785, 0.015873017
    %v787 = vrsqrt.pop %v786
    %v788 = vmul.f32 %v786, %v787
    %vm789 = vcmp.eq.f32.partialorder %v786, inf
    %v790 = vsel %vm789, %v786, %v788
    %vm791 = vcmp.eq.f32.partialorder %v786, 0.0
    %v792 = vand.u32 %v786, 2147483648
    %v793 = vsel %vm791, %v792, %v790
    %v794 = vadd.f32 %v793, 1e-05
    %v795 = vrcp.pop %v794
    %v796 = vmul.f32 %v757, %v795
    %v797 = vmul.f32 %v758, %v795
    %v798 = vmul.f32 %v759, %v795
    %v799 = vmul.f32 %v760, %v795
    %v800 = vmul.f32 %v761, %v795
    %v801 = vmul.f32 %v762, %v795
    %v802 = vmul.f32 %v763, %v795
    %v803 = vmul.f32 %v764, %v795
    %v804 = vld [vmem:[#allocation10] sm:$0xff]
    %v805 = vld [vmem:[#allocation10 + $0x8] sm:$0xff]
    %v806 = vld [vmem:[#allocation10 + $0x10] sm:$0xff]
    %v807 = vld [vmem:[#allocation10 + $0x18] sm:$0xff]
    %v808 = vld [vmem:[#allocation10 + $0x20] sm:$0xff]
    %v809 = vld [vmem:[#allocation10 + $0x28] sm:$0xff]
    %v810 = vld [vmem:[#allocation10 + $0x30] sm:$0xff]
    %v811 = vld [vmem:[#allocation10 + $0x38] sm:$0xff]
    %v812 = vld [vmem:[#allocation10 + $0x40] sm:$0xff]
    %v813 = vld [vmem:[#allocation10 + $0x48] sm:$0xff]
    %v814 = vld [vmem:[#allocation10 + $0x50] sm:$0xff]
    %v815 = vld [vmem:[#allocation10 + $0x58] sm:$0xff]
    %v816 = vld [vmem:[#allocation10 + $0x60] sm:$0xff]
    %v817 = vld [vmem:[#allocation10 + $0x68] sm:$0xff]
    %v818 = vld [vmem:[#allocation10 + $0x70] sm:$0xff]
    %v819 = vld [vmem:[#allocation10 + $0x78] sm:$0xff]
    %v820 = vld [vmem:[%s7] sm:$0x1]
    %v821 = vpack.c.bf16 %v797, %v796
    %v822 = vpack.c.bf16 %v799, %v798
    %v823 = vpack.c.bf16 %v801, %v800
    %v824 = vpack.c.bf16 %v803, %v802
    %825 = vmatprep.subr.bf16.mxu0 0
    %826 = vmatpush1.bf16.msra.mxu0 %v821
    %827 = vmatprep.subr.bf16.mxu0 0
    %828 = vmatpush1.bf16.msra.mxu0 %v822
    %829 = vmatprep.subr.bf16.mxu0 0
    %830 = vmatpush1.bf16.msra.mxu0 %v823
    %831 = vmatprep.subr.bf16.mxu0 0
    %832 = vmatpush1.bf16.msra.mxu0 %v824
    %833 = vmatprep.subr.bf16.mxu0 0
    %834 = vmatpush1.bf16.msra.mxu0 0
    %835 = vmatprep.subr.bf16.mxu0 0
    %836 = vmatpush1.bf16.msra.mxu0 0
    %837 = vmatprep.subr.bf16.mxu0 0
    %838 = vmatpush1.bf16.msra.mxu0 0
    %839 = vmatprep.subr.bf16.mxu0 0
    %840 = vmatpush1.bf16.msra.mxu0 0
    %841 = vmatprep.subr.bf16.mxu0 0
    %842 = vmatpush1.bf16.msra.mxu0 0
    %843 = vmatprep.subr.bf16.mxu0 0
    %844 = vmatpush1.bf16.msra.mxu0 0
    %845 = vmatprep.subr.bf16.mxu0 0
    %846 = vmatpush1.bf16.msra.mxu0 0
    %847 = vmatprep.subr.bf16.mxu0 0
    %848 = vmatpush1.bf16.msra.mxu0 0
    %849 = vmatprep.subr.bf16.mxu0 0
    %850 = vmatpush1.bf16.msra.mxu0 0
    %851 = vmatprep.subr.bf16.mxu0 0
    %852 = vmatpush1.bf16.msra.mxu0 0
    %853 = vmatprep.subr.bf16.mxu0 0
    %854 = vmatpush1.bf16.msra.mxu0 0
    %855 = vmatprep.subr.bf16.mxu0 0
    %856 = vmatpush1.bf16.msra.mxu0 0
    %857 = vmatprep.mubr.bf16.mxu0 0
    %858 = vmatmul.mubr.bf16.gmra.mrb[0].mxu0 %v217
    %v859 = vpop.f32.mrb[0].mxu0
    %v860 = vadd.f32 0.0, %v859
    %v861 = vpop.f32.mrb[0].mxu0
    %v862 = vpop.f32.mrb[0].mxu0
    %v863 = vadd.f32 0.0, %v862
    %v864 = vpop.f32.mrb[0].mxu0
    %865 = vmatprep.mubr.bf16.mxu0 0
    %866 = vmatmul.mubr.bf16.gmra.mrb[0].mxu0 %v220
    %v867 = vpop.f32.mrb[0].mxu0
    %v868 = vadd.f32 0.0, %v867
    %v869 = vpop.f32.mrb[0].mxu0
    %v870 = vpop.f32.mrb[0].mxu0
    %v871 = vadd.f32 0.0, %v870
    %v872 = vpop.f32.mrb[0].mxu0
    %873 = vmatprep.mubr.bf16.mxu0 0
    %874 = vmatmul.mubr.bf16.gmra.mrb[0].mxu0 %v223
    %v875 = vpop.f32.mrb[0].mxu0
    %v876 = vadd.f32 0.0, %v875
    %v877 = vpop.f32.mrb[0].mxu0
    %v878 = vpop.f32.mrb[0].mxu0
    %v879 = vadd.f32 0.0, %v878
    %v880 = vpop.f32.mrb[0].mxu0
    %881 = vmatprep.mubr.bf16.mxu0 0
    %882 = vmatmul.mubr.bf16.gmra.mrb[0].mxu0 %v226
    %v883 = vpop.f32.mrb[0].mxu0
    %v884 = vadd.f32 0.0, %v883
    %v885 = vpop.f32.mrb[0].mxu0
    %v886 = vpop.f32.mrb[0].mxu0
    %v887 = vadd.f32 0.0, %v886
    %v888 = vpop.f32.mrb[0].mxu0
    %889 = vdwg.mxu0
    %v891 = vlaneseq
    %v892 = vshrl.u32 %v891, 7
    %v893 = vsub.s32 0, %v892
    %v894 = vrot.slane %v820, %v893
    %896 = vmatprep.subr.mxu0 0.0
    %897 = vmatpush1.msra.mxu0 %v804
    %898 = vmatprep.subr.mxu0 0.0
    %899 = vmatpush1.msra.mxu0 %v805
    %900 = vmatprep.subr.mxu0 0.0
    %901 = vmatpush1.msra.mxu0 %v806
    %902 = vmatprep.subr.mxu0 0.0
    %903 = vmatpush1.msra.mxu0 %v807
    %904 = vmatprep.subr.mxu0 0.0
    %905 = vmatpush1.msra.mxu0 %v808
    %906 = vmatprep.subr.mxu0 0.0
    %907 = vmatpush1.msra.mxu0 %v809
    %908 = vmatprep.subr.mxu0 0.0
    %909 = vmatpush1.msra.mxu0 %v810
    %910 = vmatprep.subr.mxu0 0.0
    %911 = vmatpush1.msra.mxu0 %v811
    %912 = vmatprep.subr.mxu0 0.0
    %913 = vmatpush1.msra.mxu0 %v812
    %914 = vmatprep.subr.mxu0 0.0
    %915 = vmatpush1.msra.mxu0 %v813
    %916 = vmatprep.subr.mxu0 0.0
    %917 = vmatpush1.msra.mxu0 %v814
    %918 = vmatprep.subr.mxu0 0.0
    %919 = vmatpush1.msra.mxu0 %v815
    %920 = vmatprep.subr.mxu0 0.0
    %921 = vmatpush1.msra.mxu0 %v816
    %922 = vmatprep.subr.mxu0 0.0
    %923 = vmatpush1.msra.mxu0 %v817
    %924 = vmatprep.subr.mxu0 0.0
    %925 = vmatpush1.msra.mxu0 %v818
    %926 = vmatprep.subr.mxu0 0.0
    %927 = vmatpush1.msra.mxu0 %v819
    %928 = vmatprep.subr.mxu0 0.0
    %929 = vmatpush1.msra.mxu0 0.0
    %930 = vmatprep.subr.mxu0 0.0
    %931 = vmatpush1.msra.mxu0 0.0
    %932 = vmatprep.subr.mxu0 0.0
    %933 = vmatpush1.msra.mxu0 0.0
    %934 = vmatprep.subr.mxu0 0.0
    %935 = vmatpush1.msra.mxu0 0.0
    %936 = vmatprep.subr.mxu0 0.0
    %937 = vmatpush1.msra.mxu0 0.0
    %938 = vmatprep.subr.mxu0 0.0
    %939 = vmatpush1.msra.mxu0 0.0
    %940 = vmatprep.subr.mxu0 0.0
    %941 = vmatpush1.msra.mxu0 0.0
    %942 = vmatprep.subr.mxu0 0.0
    %943 = vmatpush1.msra.mxu0 0.0
    %944 = vmatprep.subr.mxu0 0.0
    %945 = vmatpush1.msra.mxu0 0.0
    %946 = vmatprep.subr.mxu0 0.0
    %947 = vmatpush1.msra.mxu0 0.0
    %948 = vmatprep.subr.mxu0 0.0
    %949 = vmatpush1.msra.mxu0 0.0
    %950 = vmatprep.subr.mxu0 0.0
    %951 = vmatpush1.msra.mxu0 0.0
    %952 = vmatprep.subr.mxu0 0.0
    %953 = vmatpush1.msra.mxu0 0.0
    %954 = vmatprep.subr.mxu0 0.0
    %955 = vmatpush1.msra.mxu0 0.0
    %956 = vmatprep.subr.mxu0 0.0
    %957 = vmatpush1.msra.mxu0 0.0
    %958 = vmatprep.subr.mxu0 0.0
    %959 = vmatpush1.msra.mxu0 0.0
    %960 = vmatprep.mubr.f32.mxu0 0.0
    %961 = vmatmul.mubr.f32.gmra.mrb[0].mxu0 %v860
    %v962 = vpop.f32.mrb[0].mxu0
    %v963 = vadd.f32 %v894, %v962
    %v964 = vpop.f32.mrb[0].mxu0
    %965 = vmatprep.mubr.f32.mxu0 0.0
    %966 = vmatmul.mubr.f32.gmra.mrb[0].mxu0 %v863
    %v967 = vpop.f32.mrb[0].mxu0
    %v968 = vadd.f32 %v894, %v967
    %v969 = vpop.f32.mrb[0].mxu0
    %970 = vmatprep.mubr.f32.mxu0 0.0
    %971 = vmatmul.mubr.f32.gmra.mrb[0].mxu0 %v868
    %v972 = vpop.f32.mrb[0].mxu0
    %v973 = vadd.f32 %v894, %v972
    %v974 = vpop.f32.mrb[0].mxu0
    %975 = vmatprep.mubr.f32.mxu0 0.0
    %976 = vmatmul.mubr.f32.gmra.mrb[0].mxu0 %v871
    %v977 = vpop.f32.mrb[0].mxu0
    %v978 = vadd.f32 %v894, %v977
    %v979 = vpop.f32.mrb[0].mxu0
    %980 = vmatprep.mubr.f32.mxu0 0.0
    %981 = vmatmul.mubr.f32.gmra.mrb[0].mxu0 %v876
    %v982 = vpop.f32.mrb[0].mxu0
    %v983 = vadd.f32 %v894, %v982
    %v984 = vpop.f32.mrb[0].mxu0
    %985 = vmatprep.mubr.f32.mxu0 0.0
    %986 = vmatmul.mubr.f32.gmra.mrb[0].mxu0 %v879
    %v987 = vpop.f32.mrb[0].mxu0
    %v988 = vadd.f32 %v894, %v987
    %v989 = vpop.f32.mrb[0].mxu0
    %990 = vmatprep.mubr.f32.mxu0 0.0
    %991 = vmatmul.mubr.f32.gmra.mrb[0].mxu0 %v884
    %v992 = vpop.f32.mrb[0].mxu0
    %v993 = vadd.f32 %v894, %v992
    %v994 = vpop.f32.mrb[0].mxu0
    %995 = vmatprep.mubr.f32.mxu0 0.0
    %996 = vmatmul.mubr.f32.gmra.mrb[0].mxu0 %v887
    %v997 = vpop.f32.mrb[0].mxu0
    %v998 = vadd.f32 %v894, %v997
    %v999 = vpop.f32.mrb[0].mxu0
    %1000 = vdwg.mxu0
    %vm1001 = vcmp.gt.f32.partialorder %v963, 0.0
    %vm1002 = vcmp.gt.f32.partialorder %v968, 0.0
    %vm1003 = vcmp.gt.f32.partialorder %v973, 0.0
    %vm1004 = vcmp.gt.f32.partialorder %v978, 0.0
    %vm1005 = vcmp.gt.f32.partialorder %v983, 0.0
    %vm1006 = vcmp.gt.f32.partialorder %v988, 0.0
    %vm1007 = vcmp.gt.f32.partialorder %v993, 0.0
    %vm1008 = vcmp.gt.f32.partialorder %v998, 0.0
    %v1009 = vmul.f32 %v963, 1.442695
    %v1010 = vpow.pop %v1009
    %v1011 = vmul.f32 %v968, 1.442695
    %v1012 = vpow.pop %v1011
    %v1013 = vmul.f32 %v973, 1.442695
    %v1014 = vpow.pop %v1013
    %v1015 = vmul.f32 %v978, 1.442695
    %v1016 = vpow.pop %v1015
    %v1017 = vmul.f32 %v983, 1.442695
    %v1018 = vpow.pop %v1017
    %v1019 = vmul.f32 %v988, 1.442695
    %v1020 = vpow.pop %v1019
    %v1021 = vmul.f32 %v993, 1.442695
    %v1022 = vpow.pop %v1021
    %v1023 = vmul.f32 %v998, 1.442695
    %v1024 = vpow.pop %v1023
    %v1025 = vsub.f32 %v1010, 1.0
    %v1026 = vsub.f32 %v1012, 1.0
    %v1027 = vsub.f32 %v1014, 1.0
    %v1028 = vsub.f32 %v1016, 1.0
    %v1029 = vsub.f32 %v1018, 1.0
    %v1030 = vsub.f32 %v1020, 1.0
    %v1031 = vsub.f32 %v1022, 1.0
    %v1032 = vsub.f32 %v1024, 1.0
    %v1033 = vsel %vm1001, %v963, %v1025
    %v1034 = vsel %vm1002, %v968, %v1026
    %v1035 = vsel %vm1003, %v973, %v1027
    %v1036 = vsel %vm1004, %v978, %v1028
    %v1037 = vsel %vm1005, %v983, %v1029
    %v1038 = vsel %vm1006, %v988, %v1030
    %v1039 = vsel %vm1007, %v993, %v1031
    %v1040 = vsel %vm1008, %v998, %v1032
    %v1041 = vadd.f32 %v1033, %v1034
    %v1042 = vadd.f32 %v1041, %v1035
    %v1043 = vadd.f32 %v1042, %v1036
    %v1044 = vadd.f32 %v1043, %v1037
    %v1045 = vadd.f32 %v1044, %v1038
    %v1046 = vadd.f32 %v1045, %v1039
    %v1047 = vadd.f32 %v1046, %v1040
    %v1048 = vrot.slane %v1047, 4
    %v1049 = vadd.f32 %v1047, %v1048
    %v1050 = vrot.slane %v1049, 2
    %v1051 = vadd.f32 %v1049, %v1050
    %v1052 = vrot.slane %v1051, 1
    %v1053 = vadd.f32 %v1051, %v1052
    %v1054 = vmul.f32 %v1053, %v457
    %v1055 = vsub.f32 %v1033, %v1054
    %v1056 = vsub.f32 %v1034, %v1054
    %v1057 = vsub.f32 %v1035, %v1054
    %v1058 = vsub.f32 %v1036, %v1054
    %v1059 = vsub.f32 %v1037, %v1054
    %v1060 = vsub.f32 %v1038, %v1054
    %v1061 = vsub.f32 %v1039, %v1054
    %v1062 = vsub.f32 %v1040, %v1054
    %v1063 = vmul.f32 %v1055, %v1055
    %v1064 = vmul.f32 %v1056, %v1056
    %v1065 = vmul.f32 %v1057, %v1057
    %v1066 = vmul.f32 %v1058, %v1058
    %v1067 = vmul.f32 %v1059, %v1059
    %v1068 = vmul.f32 %v1060, %v1060
    %v1069 = vmul.f32 %v1061, %v1061
    %v1070 = vmul.f32 %v1062, %v1062
    %v1071 = vadd.f32 %v1063, %v1064
    %v1072 = vadd.f32 %v1071, %v1065
    %v1073 = vadd.f32 %v1072, %v1066
    %v1074 = vadd.f32 %v1073, %v1067
    %v1075 = vadd.f32 %v1074, %v1068
    %v1076 = vadd.f32 %v1075, %v1069
    %v1077 = vadd.f32 %v1076, %v1070
    %v1078 = vrot.slane %v1077, 4
    %v1079 = vadd.f32 %v1077, %v1078
    %v1080 = vrot.slane %v1079, 2
    %v1081 = vadd.f32 %v1079, %v1080
    %v1082 = vrot.slane %v1081, 1
    %v1083 = vadd.f32 %v1081, %v1082
    %v1084 = vmul.f32 %v1083, 0.015873017
    %v1085 = vrsqrt.pop %v1084
    %v1086 = vmul.f32 %v1084, %v1085
    %vm1087 = vcmp.eq.f32.partialorder %v1084, inf
    %v1088 = vsel %vm1087, %v1084, %v1086
    %vm1089 = vcmp.eq.f32.partialorder %v1084, 0.0
    %v1090 = vand.u32 %v1084, 2147483648
    %v1091 = vsel %vm1089, %v1090, %v1088
    %v1092 = vadd.f32 %v1091, 1e-05
    %v1093 = vrcp.pop %v1092
    %v1094 = vmul.f32 %v1055, %v1093
    %v1095 = vmul.f32 %v1056, %v1093
    %v1096 = vmul.f32 %v1057, %v1093
    %v1097 = vmul.f32 %v1058, %v1093
    %v1098 = vmul.f32 %v1059, %v1093
    %v1099 = vmul.f32 %v1060, %v1093
    %v1100 = vmul.f32 %v1061, %v1093
    %v1101 = vmul.f32 %v1062, %v1093
    %v1102 = vld [vmem:[#allocation11] sm:$0xff]
    %v1103 = vld [vmem:[#allocation11 + $0x8] sm:$0xff]
    %v1104 = vld [vmem:[#allocation11 + $0x10] sm:$0xff]
    %v1105 = vld [vmem:[#allocation11 + $0x18] sm:$0xff]
    %v1106 = vld [vmem:[#allocation11 + $0x20] sm:$0xff]
    %v1107 = vld [vmem:[#allocation11 + $0x28] sm:$0xff]
    %v1108 = vld [vmem:[#allocation11 + $0x30] sm:$0xff]
    %v1109 = vld [vmem:[#allocation11 + $0x38] sm:$0xff]
    %v1110 = vld [vmem:[#allocation11 + $0x40] sm:$0xff]
    %v1111 = vld [vmem:[#allocation11 + $0x48] sm:$0xff]
    %v1112 = vld [vmem:[#allocation11 + $0x50] sm:$0xff]
    %v1113 = vld [vmem:[#allocation11 + $0x58] sm:$0xff]
    %v1114 = vld [vmem:[#allocation11 + $0x60] sm:$0xff]
    %v1115 = vld [vmem:[#allocation11 + $0x68] sm:$0xff]
    %v1116 = vld [vmem:[#allocation11 + $0x70] sm:$0xff]
    %v1117 = vld [vmem:[#allocation11 + $0x78] sm:$0xff]
    %v1118 = vld [vmem:[%s9] sm:$0x1]
    %v1119 = vpack.c.bf16 %v1095, %v1094
    %v1120 = vpack.c.bf16 %v1097, %v1096
    %v1121 = vpack.c.bf16 %v1099, %v1098
    %v1122 = vpack.c.bf16 %v1101, %v1100
    %1123 = vmatprep.subr.bf16.mxu0 0
    %1124 = vmatpush1.bf16.msra.mxu0 %v1119
    %1125 = vmatprep.subr.bf16.mxu0 0
    %1126 = vmatpush1.bf16.msra.mxu0 %v1120
    %1127 = vmatprep.subr.bf16.mxu0 0
    %1128 = vmatpush1.bf16.msra.mxu0 %v1121
    %1129 = vmatprep.subr.bf16.mxu0 0
    %1130 = vmatpush1.bf16.msra.mxu0 %v1122
    %1131 = vmatprep.subr.bf16.mxu0 0
    %1132 = vmatpush1.bf16.msra.mxu0 0
    %1133 = vmatprep.subr.bf16.mxu0 0
    %1134 = vmatpush1.bf16.msra.mxu0 0
    %1135 = vmatprep.subr.bf16.mxu0 0
    %1136 = vmatpush1.bf16.msra.mxu0 0
    %1137 = vmatprep.subr.bf16.mxu0 0
    %1138 = vmatpush1.bf16.msra.mxu0 0
    %1139 = vmatprep.subr.bf16.mxu0 0
    %1140 = vmatpush1.bf16.msra.mxu0 0
    %1141 = vmatprep.subr.bf16.mxu0 0
    %1142 = vmatpush1.bf16.msra.mxu0 0
    %1143 = vmatprep.subr.bf16.mxu0 0
    %1144 = vmatpush1.bf16.msra.mxu0 0
    %1145 = vmatprep.subr.bf16.mxu0 0
    %1146 = vmatpush1.bf16.msra.mxu0 0
    %1147 = vmatprep.subr.bf16.mxu0 0
    %1148 = vmatpush1.bf16.msra.mxu0 0
    %1149 = vmatprep.subr.bf16.mxu0 0
    %1150 = vmatpush1.bf16.msra.mxu0 0
    %1151 = vmatprep.subr.bf16.mxu0 0
    %1152 = vmatpush1.bf16.msra.mxu0 0
    %1153 = vmatprep.subr.bf16.mxu0 0
    %1154 = vmatpush1.bf16.msra.mxu0 0
    %1155 = vmatprep.mubr.bf16.mxu0 0
    %1156 = vmatmul.mubr.bf16.gmra.mrb[0].mxu0 %v217
    %v1157 = vpop.f32.mrb[0].mxu0
    %v1158 = vadd.f32 0.0, %v1157
    %v1159 = vpop.f32.mrb[0].mxu0
    %v1160 = vpop.f32.mrb[0].mxu0
    %v1161 = vadd.f32 0.0, %v1160
    %v1162 = vpop.f32.mrb[0].mxu0
    %1163 = vmatprep.mubr.bf16.mxu0 0
    %1164 = vmatmul.mubr.bf16.gmra.mrb[0].mxu0 %v220
    %v1165 = vpop.f32.mrb[0].mxu0
    %v1166 = vadd.f32 0.0, %v1165
    %v1167 = vpop.f32.mrb[0].mxu0
    %v1168 = vpop.f32.mrb[0].mxu0
    %v1169 = vadd.f32 0.0, %v1168
    %v1170 = vpop.f32.mrb[0].mxu0
    %1171 = vmatprep.mubr.bf16.mxu0 0
    %1172 = vmatmul.mubr.bf16.gmra.mrb[0].mxu0 %v223
    %v1173 = vpop.f32.mrb[0].mxu0
    %v1174 = vadd.f32 0.0, %v1173
    %v1175 = vpop.f32.mrb[0].mxu0
    %v1176 = vpop.f32.mrb[0].mxu0
    %v1177 = vadd.f32 0.0, %v1176
    %v1178 = vpop.f32.mrb[0].mxu0
    %1179 = vmatprep.mubr.bf16.mxu0 0
    %1180 = vmatmul.mubr.bf16.gmra.mrb[0].mxu0 %v226
    %v1181 = vpop.f32.mrb[0].mxu0
    %v1182 = vadd.f32 0.0, %v1181
    %v1183 = vpop.f32.mrb[0].mxu0
    %v1184 = vpop.f32.mrb[0].mxu0
    %v1185 = vadd.f32 0.0, %v1184
    %v1186 = vpop.f32.mrb[0].mxu0
    %1187 = vdwg.mxu0
    %v1189 = vlaneseq
    %v1190 = vshrl.u32 %v1189, 7
    %v1191 = vsub.s32 0, %v1190
    %v1192 = vrot.slane %v1118, %v1191
    %1194 = vmatprep.subr.mxu0 0.0
    %1195 = vmatpush1.msra.mxu0 %v1102
    %1196 = vmatprep.subr.mxu0 0.0
    %1197 = vmatpush1.msra.mxu0 %v1103
    %1198 = vmatprep.subr.mxu0 0.0
    %1199 = vmatpush1.msra.mxu0 %v1104
    %1200 = vmatprep.subr.mxu0 0.0
    %1201 = vmatpush1.msra.mxu0 %v1105
    %1202 = vmatprep.subr.mxu0 0.0
    %1203 = vmatpush1.msra.mxu0 %v1106
    %1204 = vmatprep.subr.mxu0 0.0
    %1205 = vmatpush1.msra.mxu0 %v1107
    %1206 = vmatprep.subr.mxu0 0.0
    %1207 = vmatpush1.msra.mxu0 %v1108
    %1208 = vmatprep.subr.mxu0 0.0
    %1209 = vmatpush1.msra.mxu0 %v1109
    %1210 = vmatprep.subr.mxu0 0.0
    %1211 = vmatpush1.msra.mxu0 %v1110
    %1212 = vmatprep.subr.mxu0 0.0
    %1213 = vmatpush1.msra.mxu0 %v1111
    %1214 = vmatprep.subr.mxu0 0.0
    %1215 = vmatpush1.msra.mxu0 %v1112
    %1216 = vmatprep.subr.mxu0 0.0
    %1217 = vmatpush1.msra.mxu0 %v1113
    %1218 = vmatprep.subr.mxu0 0.0
    %1219 = vmatpush1.msra.mxu0 %v1114
    %1220 = vmatprep.subr.mxu0 0.0
    %1221 = vmatpush1.msra.mxu0 %v1115
    %1222 = vmatprep.subr.mxu0 0.0
    %1223 = vmatpush1.msra.mxu0 %v1116
    %1224 = vmatprep.subr.mxu0 0.0
    %1225 = vmatpush1.msra.mxu0 %v1117
    %1226 = vmatprep.subr.mxu0 0.0
    %1227 = vmatpush1.msra.mxu0 0.0
    %1228 = vmatprep.subr.mxu0 0.0
    %1229 = vmatpush1.msra.mxu0 0.0
    %1230 = vmatprep.subr.mxu0 0.0
    %1231 = vmatpush1.msra.mxu0 0.0
    %1232 = vmatprep.subr.mxu0 0.0
    %1233 = vmatpush1.msra.mxu0 0.0
    %1234 = vmatprep.subr.mxu0 0.0
    %1235 = vmatpush1.msra.mxu0 0.0
    %1236 = vmatprep.subr.mxu0 0.0
    %1237 = vmatpush1.msra.mxu0 0.0
    %1238 = vmatprep.subr.mxu0 0.0
    %1239 = vmatpush1.msra.mxu0 0.0
    %1240 = vmatprep.subr.mxu0 0.0
    %1241 = vmatpush1.msra.mxu0 0.0
    %1242 = vmatprep.subr.mxu0 0.0
    %1243 = vmatpush1.msra.mxu0 0.0
    %1244 = vmatprep.subr.mxu0 0.0
    %1245 = vmatpush1.msra.mxu0 0.0
    %1246 = vmatprep.subr.mxu0 0.0
    %1247 = vmatpush1.msra.mxu0 0.0
    %1248 = vmatprep.subr.mxu0 0.0
    %1249 = vmatpush1.msra.mxu0 0.0
    %1250 = vmatprep.subr.mxu0 0.0
    %1251 = vmatpush1.msra.mxu0 0.0
    %1252 = vmatprep.subr.mxu0 0.0
    %1253 = vmatpush1.msra.mxu0 0.0
    %1254 = vmatprep.subr.mxu0 0.0
    %1255 = vmatpush1.msra.mxu0 0.0
    %1256 = vmatprep.subr.mxu0 0.0
    %1257 = vmatpush1.msra.mxu0 0.0
    %1258 = vmatprep.mubr.f32.mxu0 0.0
    %1259 = vmatmul.mubr.f32.gmra.mrb[0].mxu0 %v1158
    %v1260 = vpop.f32.mrb[0].mxu0
    %v1261 = vadd.f32 %v1192, %v1260
    %v1262 = vpop.f32.mrb[0].mxu0
    %1263 = vmatprep.mubr.f32.mxu0 0.0
    %1264 = vmatmul.mubr.f32.gmra.mrb[0].mxu0 %v1161
    %v1265 = vpop.f32.mrb[0].mxu0
    %v1266 = vadd.f32 %v1192, %v1265
    %v1267 = vpop.f32.mrb[0].mxu0
    %1268 = vmatprep.mubr.f32.mxu0 0.0
    %1269 = vmatmul.mubr.f32.gmra.mrb[0].mxu0 %v1166
    %v1270 = vpop.f32.mrb[0].mxu0
    %v1271 = vadd.f32 %v1192, %v1270
    %v1272 = vpop.f32.mrb[0].mxu0
    %1273 = vmatprep.mubr.f32.mxu0 0.0
    %1274 = vmatmul.mubr.f32.gmra.mrb[0].mxu0 %v1169
    %v1275 = vpop.f32.mrb[0].mxu0
    %v1276 = vadd.f32 %v1192, %v1275
    %v1277 = vpop.f32.mrb[0].mxu0
    %1278 = vmatprep.mubr.f32.mxu0 0.0
    %1279 = vmatmul.mubr.f32.gmra.mrb[0].mxu0 %v1174
    %v1280 = vpop.f32.mrb[0].mxu0
    %v1281 = vadd.f32 %v1192, %v1280
    %v1282 = vpop.f32.mrb[0].mxu0
    %1283 = vmatprep.mubr.f32.mxu0 0.0
    %1284 = vmatmul.mubr.f32.gmra.mrb[0].mxu0 %v1177
    %v1285 = vpop.f32.mrb[0].mxu0
    %v1286 = vadd.f32 %v1192, %v1285
    %v1287 = vpop.f32.mrb[0].mxu0
    %1288 = vmatprep.mubr.f32.mxu0 0.0
    %1289 = vmatmul.mubr.f32.gmra.mrb[0].mxu0 %v1182
    %v1290 = vpop.f32.mrb[0].mxu0
    %v1291 = vadd.f32 %v1192, %v1290
    %v1292 = vpop.f32.mrb[0].mxu0
    %1293 = vmatprep.mubr.f32.mxu0 0.0
    %1294 = vmatmul.mubr.f32.gmra.mrb[0].mxu0 %v1185
    %v1295 = vpop.f32.mrb[0].mxu0
    %v1296 = vadd.f32 %v1192, %v1295
    %v1297 = vpop.f32.mrb[0].mxu0
    %1298 = vdwg.mxu0
    %vm1299 = vcmp.gt.f32.partialorder %v1261, 0.0
    %vm1300 = vcmp.gt.f32.partialorder %v1266, 0.0
    %vm1301 = vcmp.gt.f32.partialorder %v1271, 0.0
    %vm1302 = vcmp.gt.f32.partialorder %v1276, 0.0
    %vm1303 = vcmp.gt.f32.partialorder %v1281, 0.0
    %vm1304 = vcmp.gt.f32.partialorder %v1286, 0.0
    %vm1305 = vcmp.gt.f32.partialorder %v1291, 0.0
    %vm1306 = vcmp.gt.f32.partialorder %v1296, 0.0
    %v1307 = vmul.f32 %v1261, 1.442695
    %v1308 = vpow.pop %v1307
    %v1309 = vmul.f32 %v1266, 1.442695
    %v1310 = vpow.pop %v1309
    %v1311 = vmul.f32 %v1271, 1.442695
    %v1312 = vpow.pop %v1311
    %v1313 = vmul.f32 %v1276, 1.442695
    %v1314 = vpow.pop %v1313
    %v1315 = vmul.f32 %v1281, 1.442695
    %v1316 = vpow.pop %v1315
    %v1317 = vmul.f32 %v1286, 1.442695
    %v1318 = vpow.pop %v1317
    %v1319 = vmul.f32 %v1291, 1.442695
    %v1320 = vpow.pop %v1319
    %v1321 = vmul.f32 %v1296, 1.442695
    %v1322 = vpow.pop %v1321
    %v1323 = vsub.f32 %v1308, 1.0
    %v1324 = vsub.f32 %v1310, 1.0
    %v1325 = vsub.f32 %v1312, 1.0
    %v1326 = vsub.f32 %v1314, 1.0
    %v1327 = vsub.f32 %v1316, 1.0
    %v1328 = vsub.f32 %v1318, 1.0
    %v1329 = vsub.f32 %v1320, 1.0
    %v1330 = vsub.f32 %v1322, 1.0
    %v1331 = vsel %vm1299, %v1261, %v1323
    %v1332 = vsel %vm1300, %v1266, %v1324
    %v1333 = vsel %vm1301, %v1271, %v1325
    %v1334 = vsel %vm1302, %v1276, %v1326
    %v1335 = vsel %vm1303, %v1281, %v1327
    %v1336 = vsel %vm1304, %v1286, %v1328
    %v1337 = vsel %vm1305, %v1291, %v1329
    %v1338 = vsel %vm1306, %v1296, %v1330
    %v1339 = vadd.f32 %v1331, %v1332
    %v1340 = vadd.f32 %v1339, %v1333
    %v1341 = vadd.f32 %v1340, %v1334
    %v1342 = vadd.f32 %v1341, %v1335
    %v1343 = vadd.f32 %v1342, %v1336
    %v1344 = vadd.f32 %v1343, %v1337
    %v1345 = vadd.f32 %v1344, %v1338
    %v1346 = vrot.slane %v1345, 4
    %v1347 = vadd.f32 %v1345, %v1346
    %v1348 = vrot.slane %v1347, 2
    %v1349 = vadd.f32 %v1347, %v1348
    %v1350 = vrot.slane %v1349, 1
    %v1351 = vadd.f32 %v1349, %v1350
    %v1352 = vmul.f32 %v1351, %v457
    %v1353 = vsub.f32 %v1331, %v1352
    %v1354 = vsub.f32 %v1332, %v1352
    %v1355 = vsub.f32 %v1333, %v1352
    %v1356 = vsub.f32 %v1334, %v1352
    %v1357 = vsub.f32 %v1335, %v1352
    %v1358 = vsub.f32 %v1336, %v1352
    %v1359 = vsub.f32 %v1337, %v1352
    %v1360 = vsub.f32 %v1338, %v1352
    %v1361 = vmul.f32 %v1353, %v1353
    %v1362 = vmul.f32 %v1354, %v1354
    %v1363 = vmul.f32 %v1355, %v1355
    %v1364 = vmul.f32 %v1356, %v1356
    %v1365 = vmul.f32 %v1357, %v1357
    %v1366 = vmul.f32 %v1358, %v1358
    %v1367 = vmul.f32 %v1359, %v1359
    %v1368 = vmul.f32 %v1360, %v1360
    %v1369 = vadd.f32 %v1361, %v1362
    %v1370 = vadd.f32 %v1369, %v1363
    %v1371 = vadd.f32 %v1370, %v1364
    %v1372 = vadd.f32 %v1371, %v1365
    %v1373 = vadd.f32 %v1372, %v1366
    %v1374 = vadd.f32 %v1373, %v1367
    %v1375 = vadd.f32 %v1374, %v1368
    %v1376 = vrot.slane %v1375, 4
    %v1377 = vadd.f32 %v1375, %v1376
    %v1378 = vrot.slane %v1377, 2
    %v1379 = vadd.f32 %v1377, %v1378
    %v1380 = vrot.slane %v1379, 1
    %v1381 = vadd.f32 %v1379, %v1380
    %v1382 = vmul.f32 %v1381, 0.015873017
    %v1383 = vrsqrt.pop %v1382
    %v1384 = vmul.f32 %v1382, %v1383
    %vm1385 = vcmp.eq.f32.partialorder %v1382, inf
    %v1386 = vsel %vm1385, %v1382, %v1384
    %vm1387 = vcmp.eq.f32.partialorder %v1382, 0.0
    %v1388 = vand.u32 %v1382, 2147483648
    %v1389 = vsel %vm1387, %v1388, %v1386
    %v1390 = vadd.f32 %v1389, 1e-05
    %v1391 = vrcp.pop %v1390
    %v1392 = vmul.f32 %v1353, %v1391
    %v1393 = vmul.f32 %v1354, %v1391
    %v1394 = vmul.f32 %v1355, %v1391
    %v1395 = vmul.f32 %v1356, %v1391
    %v1396 = vmul.f32 %v1357, %v1391
    %v1397 = vmul.f32 %v1358, %v1391
    %v1398 = vmul.f32 %v1359, %v1391
    %v1399 = vmul.f32 %v1360, %v1391
    %v1400 = vld [vmem:[#allocation13] sm:$0xff]
    %v1401 = vld [vmem:[#allocation13 + $0x8] sm:$0xff]
    %v1402 = vld [vmem:[#allocation13 + $0x10] sm:$0xff]
    %v1403 = vld [vmem:[#allocation13 + $0x18] sm:$0xff]
    %v1404 = vld [vmem:[#allocation13 + $0x20] sm:$0xff]
    %v1405 = vld [vmem:[#allocation13 + $0x28] sm:$0xff]
    %v1406 = vld [vmem:[#allocation13 + $0x30] sm:$0xff]
    %v1407 = vld [vmem:[#allocation13 + $0x38] sm:$0xff]
    %v1408 = vld [vmem:[#allocation13 + $0x40] sm:$0xff]
    %v1409 = vld [vmem:[#allocation13 + $0x48] sm:$0xff]
    %v1410 = vld [vmem:[#allocation13 + $0x50] sm:$0xff]
    %v1411 = vld [vmem:[#allocation13 + $0x58] sm:$0xff]
    %v1412 = vld [vmem:[#allocation13 + $0x60] sm:$0xff]
    %v1413 = vld [vmem:[#allocation13 + $0x68] sm:$0xff]
    %v1414 = vld [vmem:[#allocation13 + $0x70] sm:$0xff]
    %v1415 = vld [vmem:[#allocation13 + $0x78] sm:$0xff]
    %v1416 = vld [vmem:[#allocation13 + $0x80] sm:$0xff]
    %v1417 = vld [vmem:[#allocation13 + $0x88] sm:$0xff]
    %v1418 = vld [vmem:[#allocation13 + $0x90] sm:$0xff]
    %v1419 = vld [vmem:[#allocation13 + $0x98] sm:$0xff]
    %v1420 = vld [vmem:[#allocation13 + $0xa0] sm:$0xff]
    %v1421 = vld [vmem:[#allocation13 + $0xa8] sm:$0xff]
    %v1422 = vld [vmem:[#allocation13 + $0xb0] sm:$0xff]
    %v1423 = vld [vmem:[#allocation13 + $0xb8] sm:$0xff]
    %v1424 = vld [vmem:[#allocation13 + $0xc0] sm:$0xff]
    %v1425 = vld [vmem:[#allocation13 + $0xc8] sm:$0xff]
    %v1426 = vld [vmem:[#allocation13 + $0xd0] sm:$0xff]
    %v1427 = vld [vmem:[#allocation13 + $0xd8] sm:$0xff]
    %v1428 = vld [vmem:[#allocation13 + $0xe0] sm:$0xff]
    %v1429 = vld [vmem:[#allocation13 + $0xe8] sm:$0xff]
    %v1430 = vld [vmem:[#allocation13 + $0xf0] sm:$0xff]
    %v1431 = vld [vmem:[#allocation13 + $0xf8] sm:$0xff]
    %v1432 = vld [vmem:[%s11] sm:$0x3]
    %v1433 = vpack.c.bf16 %v1393, %v1392
    %v1434 = vpack.c.bf16 %v1395, %v1394
    %v1435 = vpack.c.bf16 %v1397, %v1396
    %v1436 = vpack.c.bf16 %v1399, %v1398
    %1437 = vmatprep.subr.bf16.mxu0 0
    %1438 = vmatpush1.bf16.msra.mxu0 %v1433
    %1439 = vmatprep.subr.bf16.mxu0 0
    %1440 = vmatpush1.bf16.msra.mxu0 %v1434
    %1441 = vmatprep.subr.bf16.mxu0 0
    %1442 = vmatpush1.bf16.msra.mxu0 %v1435
    %1443 = vmatprep.subr.bf16.mxu0 0
    %1444 = vmatpush1.bf16.msra.mxu0 %v1436
    %1445 = vmatprep.subr.bf16.mxu0 0
    %1446 = vmatpush1.bf16.msra.mxu0 0
    %1447 = vmatprep.subr.bf16.mxu0 0
    %1448 = vmatpush1.bf16.msra.mxu0 0
    %1449 = vmatprep.subr.bf16.mxu0 0
    %1450 = vmatpush1.bf16.msra.mxu0 0
    %1451 = vmatprep.subr.bf16.mxu0 0
    %1452 = vmatpush1.bf16.msra.mxu0 0
    %1453 = vmatprep.subr.bf16.mxu0 0
    %1454 = vmatpush1.bf16.msra.mxu0 0
    %1455 = vmatprep.subr.bf16.mxu0 0
    %1456 = vmatpush1.bf16.msra.mxu0 0
    %1457 = vmatprep.subr.bf16.mxu0 0
    %1458 = vmatpush1.bf16.msra.mxu0 0
    %1459 = vmatprep.subr.bf16.mxu0 0
    %1460 = vmatpush1.bf16.msra.mxu0 0
    %1461 = vmatprep.subr.bf16.mxu0 0
    %1462 = vmatpush1.bf16.msra.mxu0 0
    %1463 = vmatprep.subr.bf16.mxu0 0
    %1464 = vmatpush1.bf16.msra.mxu0 0
    %1465 = vmatprep.subr.bf16.mxu0 0
    %1466 = vmatpush1.bf16.msra.mxu0 0
    %1467 = vmatprep.subr.bf16.mxu0 0
    %1468 = vmatpush1.bf16.msra.mxu0 0
    %1469 = vmatprep.mubr.bf16.mxu0 0
    %1470 = vmatmul.mubr.bf16.gmra.mrb[0].mxu0 %v217
    %v1471 = vpop.f32.mrb[0].mxu0
    %v1472 = vadd.f32 0.0, %v1471
    %v1473 = vpop.f32.mrb[0].mxu0
    %v1474 = vpop.f32.mrb[0].mxu0
    %v1475 = vadd.f32 0.0, %v1474
    %v1476 = vpop.f32.mrb[0].mxu0
    %1477 = vmatprep.mubr.bf16.mxu0 0
    %1478 = vmatmul.mubr.bf16.gmra.mrb[0].mxu0 %v220
    %v1479 = vpop.f32.mrb[0].mxu0
    %v1480 = vadd.f32 0.0, %v1479
    %v1481 = vpop.f32.mrb[0].mxu0
    %v1482 = vpop.f32.mrb[0].mxu0
    %v1483 = vadd.f32 0.0, %v1482
    %v1484 = vpop.f32.mrb[0].mxu0
    %1485 = vmatprep.mubr.bf16.mxu0 0
    %1486 = vmatmul.mubr.bf16.gmra.mrb[0].mxu0 %v223
    %v1487 = vpop.f32.mrb[0].mxu0
    %v1488 = vadd.f32 0.0, %v1487
    %v1489 = vpop.f32.mrb[0].mxu0
    %v1490 = vpop.f32.mrb[0].mxu0
    %v1491 = vadd.f32 0.0, %v1490
    %v1492 = vpop.f32.mrb[0].mxu0
    %1493 = vmatprep.mubr.bf16.mxu0 0
    %1494 = vmatmul.mubr.bf16.gmra.mrb[0].mxu0 %v226
    %v1495 = vpop.f32.mrb[0].mxu0
    %v1496 = vadd.f32 0.0, %v1495
    %v1497 = vpop.f32.mrb[0].mxu0
    %v1498 = vpop.f32.mrb[0].mxu0
    %v1499 = vadd.f32 0.0, %v1498
    %v1500 = vpop.f32.mrb[0].mxu0
    %1501 = vdwg.mxu0
    %v1503 = vlaneseq
    %v1504 = vshrl.u32 %v1503, 7
    %v1505 = vsub.s32 0, %v1504
    %v1506 = vrot.slane %v1432, %v1505
    %v1507 = vlaneseq
    %v1508 = vshrl.u32 %v1507, 7
    %v1509 = vsub.s32 1, %v1508
    %v1510 = vrot.slane %v1432, %v1509
    %1513 = vmatprep.subr.mxu0 %v1401
    %1514 = vmatpush1.msra.mxu0 %v1400
    %1515 = vmatprep.subr.mxu0 %v1403
    %1516 = vmatpush1.msra.mxu0 %v1402
    %1517 = vmatprep.subr.mxu0 %v1405
    %1518 = vmatpush1.msra.mxu0 %v1404
    %1519 = vmatprep.subr.mxu0 %v1407
    %1520 = vmatpush1.msra.mxu0 %v1406
    %1521 = vmatprep.subr.mxu0 %v1409
    %1522 = vmatpush1.msra.mxu0 %v1408
    %1523 = vmatprep.subr.mxu0 %v1411
    %1524 = vmatpush1.msra.mxu0 %v1410
    %1525 = vmatprep.subr.mxu0 %v1413
    %1526 = vmatpush1.msra.mxu0 %v1412
    %1527 = vmatprep.subr.mxu0 %v1415
    %1528 = vmatpush1.msra.mxu0 %v1414
    %1529 = vmatprep.subr.mxu0 %v1417
    %1530 = vmatpush1.msra.mxu0 %v1416
    %1531 = vmatprep.subr.mxu0 %v1419
    %1532 = vmatpush1.msra.mxu0 %v1418
    %1533 = vmatprep.subr.mxu0 %v1421
    %1534 = vmatpush1.msra.mxu0 %v1420
    %1535 = vmatprep.subr.mxu0 %v1423
    %1536 = vmatpush1.msra.mxu0 %v1422
    %1537 = vmatprep.subr.mxu0 %v1425
    %1538 = vmatpush1.msra.mxu0 %v1424
    %1539 = vmatprep.subr.mxu0 %v1427
    %1540 = vmatpush1.msra.mxu0 %v1426
    %1541 = vmatprep.subr.mxu0 %v1429
    %1542 = vmatpush1.msra.mxu0 %v1428
    %1543 = vmatprep.subr.mxu0 %v1431
    %1544 = vmatpush1.msra.mxu0 %v1430
    %1545 = vmatprep.subr.mxu0 0.0
    %1546 = vmatpush1.msra.mxu0 0.0
    %1547 = vmatprep.subr.mxu0 0.0
    %1548 = vmatpush1.msra.mxu0 0.0
    %1549 = vmatprep.subr.mxu0 0.0
    %1550 = vmatpush1.msra.mxu0 0.0
    %1551 = vmatprep.subr.mxu0 0.0
    %1552 = vmatpush1.msra.mxu0 0.0
    %1553 = vmatprep.subr.mxu0 0.0
    %1554 = vmatpush1.msra.mxu0 0.0
    %1555 = vmatprep.subr.mxu0 0.0
    %1556 = vmatpush1.msra.mxu0 0.0
    %1557 = vmatprep.subr.mxu0 0.0
    %1558 = vmatpush1.msra.mxu0 0.0
    %1559 = vmatprep.subr.mxu0 0.0
    %1560 = vmatpush1.msra.mxu0 0.0
    %1561 = vmatprep.subr.mxu0 0.0
    %1562 = vmatpush1.msra.mxu0 0.0
    %1563 = vmatprep.subr.mxu0 0.0
    %1564 = vmatpush1.msra.mxu0 0.0
    %1565 = vmatprep.subr.mxu0 0.0
    %1566 = vmatpush1.msra.mxu0 0.0
    %1567 = vmatprep.subr.mxu0 0.0
    %1568 = vmatpush1.msra.mxu0 0.0
    %1569 = vmatprep.subr.mxu0 0.0
    %1570 = vmatpush1.msra.mxu0 0.0
    %1571 = vmatprep.subr.mxu0 0.0
    %1572 = vmatpush1.msra.mxu0 0.0
    %1573 = vmatprep.subr.mxu0 0.0
    %1574 = vmatpush1.msra.mxu0 0.0
    %1575 = vmatprep.subr.mxu0 0.0
    %1576 = vmatpush1.msra.mxu0 0.0
    %1577 = vmatprep.mubr.f32.mxu0 0.0
    %1578 = vmatmul.mubr.f32.gmra.mrb[0].mxu0 %v1472
    %v1579 = vpop.f32.mrb[0].mxu0
    %v1580 = vadd.f32 %v1506, %v1579
    %v1581 = vpop.f32.mrb[0].mxu0
    %v1582 = vadd.f32 %v1510, %v1581
    %1583 = vmatprep.mubr.f32.mxu0 0.0
    %1584 = vmatmul.mubr.f32.gmra.mrb[0].mxu0 %v1475
    %v1585 = vpop.f32.mrb[0].mxu0
    %v1586 = vadd.f32 %v1506, %v1585
    %v1587 = vpop.f32.mrb[0].mxu0
    %v1588 = vadd.f32 %v1510, %v1587
    %1589 = vmatprep.mubr.f32.mxu0 0.0
    %1590 = vmatmul.mubr.f32.gmra.mrb[0].mxu0 %v1480
    %v1591 = vpop.f32.mrb[0].mxu0
    %v1592 = vadd.f32 %v1506, %v1591
    %v1593 = vpop.f32.mrb[0].mxu0
    %v1594 = vadd.f32 %v1510, %v1593
    %1595 = vmatprep.mubr.f32.mxu0 0.0
    %1596 = vmatmul.mubr.f32.gmra.mrb[0].mxu0 %v1483
    %v1597 = vpop.f32.mrb[0].mxu0
    %v1598 = vadd.f32 %v1506, %v1597
    %v1599 = vpop.f32.mrb[0].mxu0
    %v1600 = vadd.f32 %v1510, %v1599
    %1601 = vmatprep.mubr.f32.mxu0 0.0
    %1602 = vmatmul.mubr.f32.gmra.mrb[0].mxu0 %v1488
    %v1603 = vpop.f32.mrb[0].mxu0
    %v1604 = vadd.f32 %v1506, %v1603
    %v1605 = vpop.f32.mrb[0].mxu0
    %v1606 = vadd.f32 %v1510, %v1605
    %1607 = vmatprep.mubr.f32.mxu0 0.0
    %1608 = vmatmul.mubr.f32.gmra.mrb[0].mxu0 %v1491
    %v1609 = vpop.f32.mrb[0].mxu0
    %v1610 = vadd.f32 %v1506, %v1609
    %v1611 = vpop.f32.mrb[0].mxu0
    %v1612 = vadd.f32 %v1510, %v1611
    %1613 = vmatprep.mubr.f32.mxu0 0.0
    %1614 = vmatmul.mubr.f32.gmra.mrb[0].mxu0 %v1496
    %v1615 = vpop.f32.mrb[0].mxu0
    %v1616 = vadd.f32 %v1506, %v1615
    %v1617 = vpop.f32.mrb[0].mxu0
    %v1618 = vadd.f32 %v1510, %v1617
    %1619 = vmatprep.mubr.f32.mxu0 0.0
    %1620 = vmatmul.mubr.f32.gmra.mrb[0].mxu0 %v1499
    %v1621 = vpop.f32.mrb[0].mxu0
    %v1622 = vadd.f32 %v1506, %v1621
    %v1623 = vpop.f32.mrb[0].mxu0
    %v1624 = vadd.f32 %v1510, %v1623
    %1625 = vdwg.mxu0
    %vm1626 = vcmp.gt.f32.partialorder %v1580, 0.0
    %vm1627 = vcmp.gt.f32.partialorder %v1582, 0.0
    %vm1628 = vcmp.gt.f32.partialorder %v1586, 0.0
    %vm1629 = vcmp.gt.f32.partialorder %v1588, 0.0
    %vm1630 = vcmp.gt.f32.partialorder %v1592, 0.0
    %vm1631 = vcmp.gt.f32.partialorder %v1594, 0.0
    %vm1632 = vcmp.gt.f32.partialorder %v1598, 0.0
    %vm1633 = vcmp.gt.f32.partialorder %v1600, 0.0
    %vm1634 = vcmp.gt.f32.partialorder %v1604, 0.0
    %vm1635 = vcmp.gt.f32.partialorder %v1606, 0.0
    %vm1636 = vcmp.gt.f32.partialorder %v1610, 0.0
    %vm1637 = vcmp.gt.f32.partialorder %v1612, 0.0
    %vm1638 = vcmp.gt.f32.partialorder %v1616, 0.0
    %vm1639 = vcmp.gt.f32.partialorder %v1618, 0.0
    %vm1640 = vcmp.gt.f32.partialorder %v1622, 0.0
    %vm1641 = vcmp.gt.f32.partialorder %v1624, 0.0
    %v1642 = vmul.f32 %v1580, 1.442695
    %v1643 = vpow.pop %v1642
    %v1644 = vmul.f32 %v1582, 1.442695
    %v1645 = vpow.pop %v1644
    %v1646 = vmul.f32 %v1586, 1.442695
    %v1647 = vpow.pop %v1646
    %v1648 = vmul.f32 %v1588, 1.442695
    %v1649 = vpow.pop %v1648
    %v1650 = vmul.f32 %v1592, 1.442695
    %v1651 = vpow.pop %v1650
    %v1652 = vmul.f32 %v1594, 1.442695
    %v1653 = vpow.pop %v1652
    %v1654 = vmul.f32 %v1598, 1.442695
    %v1655 = vpow.pop %v1654
    %v1656 = vmul.f32 %v1600, 1.442695
    %v1657 = vpow.pop %v1656
    %v1658 = vmul.f32 %v1604, 1.442695
    %v1659 = vpow.pop %v1658
    %v1660 = vmul.f32 %v1606, 1.442695
    %v1661 = vpow.pop %v1660
    %v1662 = vmul.f32 %v1610, 1.442695
    %v1663 = vpow.pop %v1662
    %v1664 = vmul.f32 %v1612, 1.442695
    %v1665 = vpow.pop %v1664
    %v1666 = vmul.f32 %v1616, 1.442695
    %v1667 = vpow.pop %v1666
    %v1668 = vmul.f32 %v1618, 1.442695
    %v1669 = vpow.pop %v1668
    %v1670 = vmul.f32 %v1622, 1.442695
    %v1671 = vpow.pop %v1670
    %v1672 = vmul.f32 %v1624, 1.442695
    %v1673 = vpow.pop %v1672
    %v1674 = vsub.f32 %v1643, 1.0
    %v1675 = vsub.f32 %v1645, 1.0
    %v1676 = vsub.f32 %v1647, 1.0
    %v1677 = vsub.f32 %v1649, 1.0
    %v1678 = vsub.f32 %v1651, 1.0
    %v1679 = vsub.f32 %v1653, 1.0
    %v1680 = vsub.f32 %v1655, 1.0
    %v1681 = vsub.f32 %v1657, 1.0
    %v1682 = vsub.f32 %v1659, 1.0
    %v1683 = vsub.f32 %v1661, 1.0
    %v1684 = vsub.f32 %v1663, 1.0
    %v1685 = vsub.f32 %v1665, 1.0
    %v1686 = vsub.f32 %v1667, 1.0
    %v1687 = vsub.f32 %v1669, 1.0
    %v1688 = vsub.f32 %v1671, 1.0
    %v1689 = vsub.f32 %v1673, 1.0
    %v1690 = vsel %vm1626, %v1580, %v1674
    %v1691 = vsel %vm1627, %v1582, %v1675
    %v1692 = vsel %vm1628, %v1586, %v1676
    %v1693 = vsel %vm1629, %v1588, %v1677
    %v1694 = vsel %vm1630, %v1592, %v1678
    %v1695 = vsel %vm1631, %v1594, %v1679
    %v1696 = vsel %vm1632, %v1598, %v1680
    %v1697 = vsel %vm1633, %v1600, %v1681
    %v1698 = vsel %vm1634, %v1604, %v1682
    %v1699 = vsel %vm1635, %v1606, %v1683
    %v1700 = vsel %vm1636, %v1610, %v1684
    %v1701 = vsel %vm1637, %v1612, %v1685
    %v1702 = vsel %vm1638, %v1616, %v1686
    %v1703 = vsel %vm1639, %v1618, %v1687
    %v1704 = vsel %vm1640, %v1622, %v1688
    %v1705 = vsel %vm1641, %v1624, %v1689
    %v1706 = vadd.f32 %v1690, %v1692
    %v1707 = vadd.f32 %v1706, %v1694
    %v1708 = vadd.f32 %v1707, %v1696
    %v1709 = vadd.f32 %v1708, %v1698
    %v1710 = vadd.f32 %v1709, %v1700
    %v1711 = vadd.f32 %v1710, %v1702
    %v1712 = vadd.f32 %v1711, %v1704
    %v1713 = vrot.slane %v1712, 4
    %v1714 = vadd.f32 %v1712, %v1713
    %v1715 = vrot.slane %v1714, 2
    %v1716 = vadd.f32 %v1714, %v1715
    %v1717 = vrot.slane %v1716, 1
    %v1718 = vadd.f32 %v1716, %v1717
    %v1719 = vadd.f32 %v1691, %v1693
    %v1720 = vadd.f32 %v1719, %v1695
    %v1721 = vadd.f32 %v1720, %v1697
    %v1722 = vadd.f32 %v1721, %v1699
    %v1723 = vadd.f32 %v1722, %v1701
    %v1724 = vadd.f32 %v1723, %v1703
    %v1725 = vadd.f32 %v1724, %v1705
    %v1726 = vrot.slane %v1725, 4
    %v1727 = vadd.f32 %v1725, %v1726
    %v1728 = vrot.slane %v1727, 2
    %v1729 = vadd.f32 %v1727, %v1728
    %v1730 = vrot.slane %v1729, 1
    %v1731 = vadd.f32 %v1729, %v1730
    %v1732 = vmul.f32 %v1718, %v457
    %v1733 = vmul.f32 %v1731, %v457
    %v1734 = vsub.f32 %v1690, %v1732
    %v1735 = vsub.f32 %v1691, %v1733
    %v1736 = vsub.f32 %v1692, %v1732
    %v1737 = vsub.f32 %v1693, %v1733
    %v1738 = vsub.f32 %v1694, %v1732
    %v1739 = vsub.f32 %v1695, %v1733
    %v1740 = vsub.f32 %v1696, %v1732
    %v1741 = vsub.f32 %v1697, %v1733
    %v1742 = vsub.f32 %v1698, %v1732
    %v1743 = vsub.f32 %v1699, %v1733
    %v1744 = vsub.f32 %v1700, %v1732
    %v1745 = vsub.f32 %v1701, %v1733
    %v1746 = vsub.f32 %v1702, %v1732
    %v1747 = vsub.f32 %v1703, %v1733
    %v1748 = vsub.f32 %v1704, %v1732
    %v1749 = vsub.f32 %v1705, %v1733
    %v1750 = vmul.f32 %v1734, %v1734
    %v1751 = vmul.f32 %v1735, %v1735
    %v1752 = vmul.f32 %v1736, %v1736
    %v1753 = vmul.f32 %v1737, %v1737
    %v1754 = vmul.f32 %v1738, %v1738
    %v1755 = vmul.f32 %v1739, %v1739
    %v1756 = vmul.f32 %v1740, %v1740
    %v1757 = vmul.f32 %v1741, %v1741
    %v1758 = vmul.f32 %v1742, %v1742
    %v1759 = vmul.f32 %v1743, %v1743
    %v1760 = vmul.f32 %v1744, %v1744
    %v1761 = vmul.f32 %v1745, %v1745
    %v1762 = vmul.f32 %v1746, %v1746
    %v1763 = vmul.f32 %v1747, %v1747
    %v1764 = vmul.f32 %v1748, %v1748
    %v1765 = vmul.f32 %v1749, %v1749
    %v1766 = vadd.f32 %v1750, %v1752
    %v1767 = vadd.f32 %v1766, %v1754
    %v1768 = vadd.f32 %v1767, %v1756
    %v1769 = vadd.f32 %v1768, %v1758
    %v1770 = vadd.f32 %v1769, %v1760
    %v1771 = vadd.f32 %v1770, %v1762
    %v1772 = vadd.f32 %v1771, %v1764
    %v1773 = vrot.slane %v1772, 4
    %v1774 = vadd.f32 %v1772, %v1773
    %v1775 = vrot.slane %v1774, 2
    %v1776 = vadd.f32 %v1774, %v1775
    %v1777 = vrot.slane %v1776, 1
    %v1778 = vadd.f32 %v1776, %v1777
    %v1779 = vadd.f32 %v1751, %v1753
    %v1780 = vadd.f32 %v1779, %v1755
    %v1781 = vadd.f32 %v1780, %v1757
    %v1782 = vadd.f32 %v1781, %v1759
    %v1783 = vadd.f32 %v1782, %v1761
    %v1784 = vadd.f32 %v1783, %v1763
    %v1785 = vadd.f32 %v1784, %v1765
    %v1786 = vrot.slane %v1785, 4
    %v1787 = vadd.f32 %v1785, %v1786
    %v1788 = vrot.slane %v1787, 2
    %v1789 = vadd.f32 %v1787, %v1788
    %v1790 = vrot.slane %v1789, 1
    %v1791 = vadd.f32 %v1789, %v1790
    %v1792 = vmul.f32 %v1778, 0.015873017
    %v1793 = vmul.f32 %v1791, 0.015873017
    %v1794 = vrsqrt.pop %v1792
    %v1795 = vmul.f32 %v1792, %v1794
    %vm1796 = vcmp.eq.f32.partialorder %v1792, inf
    %v1797 = vsel %vm1796, %v1792, %v1795
    %vm1798 = vcmp.eq.f32.partialorder %v1792, 0.0
    %v1799 = vand.u32 %v1792, 2147483648
    %v1800 = vsel %vm1798, %v1799, %v1797
    %v1801 = vrsqrt.pop %v1793
    %v1802 = vmul.f32 %v1793, %v1801
    %vm1803 = vcmp.eq.f32.partialorder %v1793, inf
    %v1804 = vsel %vm1803, %v1793, %v1802
    %vm1805 = vcmp.eq.f32.partialorder %v1793, 0.0
    %v1806 = vand.u32 %v1793, 2147483648
    %v1807 = vsel %vm1805, %v1806, %v1804
    %v1808 = vadd.f32 %v1800, 1e-05
    %v1809 = vadd.f32 %v1807, 1e-05
    %v1810 = vrcp.pop %v1808
    %v1811 = vrcp.pop %v1809
    %v1812 = vmul.f32 %v1734, %v1810
    %v1813 = vmul.f32 %v1735, %v1811
    %v1814 = vmul.f32 %v1736, %v1810
    %v1815 = vmul.f32 %v1737, %v1811
    %v1816 = vmul.f32 %v1738, %v1810
    %v1817 = vmul.f32 %v1739, %v1811
    %v1818 = vmul.f32 %v1740, %v1810
    %v1819 = vmul.f32 %v1741, %v1811
    %v1820 = vmul.f32 %v1742, %v1810
    %v1821 = vmul.f32 %v1743, %v1811
    %v1822 = vmul.f32 %v1744, %v1810
    %v1823 = vmul.f32 %v1745, %v1811
    %v1824 = vmul.f32 %v1746, %v1810
    %v1825 = vmul.f32 %v1747, %v1811
    %v1826 = vmul.f32 %v1748, %v1810
    %v1827 = vmul.f32 %v1749, %v1811
    %v1828 = vld [vmem:[#allocation14] sm:$0xff]
    %v1829 = vld [vmem:[#allocation14 + $0x8] sm:$0xff]
    %v1830 = vld [vmem:[#allocation14 + $0x10] sm:$0xff]
    %v1831 = vld [vmem:[#allocation14 + $0x18] sm:$0xff]
    %v1832 = vld [vmem:[#allocation14 + $0x20] sm:$0xff]
    %v1833 = vld [vmem:[#allocation14 + $0x28] sm:$0xff]
    %v1834 = vld [vmem:[#allocation14 + $0x30] sm:$0xff]
    %v1835 = vld [vmem:[#allocation14 + $0x38] sm:$0xff]
    %v1836 = vld [vmem:[#allocation14 + $0x40] sm:$0xff]
    %v1837 = vld [vmem:[#allocation14 + $0x48] sm:$0xff]
    %v1838 = vld [vmem:[#allocation14 + $0x50] sm:$0xff]
    %v1839 = vld [vmem:[#allocation14 + $0x58] sm:$0xff]
    %v1840 = vld [vmem:[#allocation14 + $0x60] sm:$0xff]
    %v1841 = vld [vmem:[#allocation14 + $0x68] sm:$0xff]
    %v1842 = vld [vmem:[#allocation14 + $0x70] sm:$0xff]
    %v1843 = vld [vmem:[#allocation14 + $0x78] sm:$0xff]
    %v1844 = vld [vmem:[#allocation14 + $0x80] sm:$0xff]
    %v1845 = vld [vmem:[#allocation14 + $0x88] sm:$0xff]
    %v1846 = vld [vmem:[#allocation14 + $0x90] sm:$0xff]
    %v1847 = vld [vmem:[#allocation14 + $0x98] sm:$0xff]
    %v1848 = vld [vmem:[#allocation14 + $0xa0] sm:$0xff]
    %v1849 = vld [vmem:[#allocation14 + $0xa8] sm:$0xff]
    %v1850 = vld [vmem:[#allocation14 + $0xb0] sm:$0xff]
    %v1851 = vld [vmem:[#allocation14 + $0xb8] sm:$0xff]
    %v1852 = vld [vmem:[#allocation14 + $0xc0] sm:$0xff]
    %v1853 = vld [vmem:[#allocation14 + $0xc8] sm:$0xff]
    %v1854 = vld [vmem:[#allocation14 + $0xd0] sm:$0xff]
    %v1855 = vld [vmem:[#allocation14 + $0xd8] sm:$0xff]
    %v1856 = vld [vmem:[#allocation14 + $0xe0] sm:$0xff]
    %v1857 = vld [vmem:[#allocation14 + $0xe8] sm:$0xff]
    %v1858 = vld [vmem:[#allocation14 + $0xf0] sm:$0xff]
    %v1859 = vld [vmem:[#allocation14 + $0xf8] sm:$0xff]
    %v1860 = vld [vmem:[%s13] sm:$0x1]
    %1861 = vmatprep.subr.mxu0 0.0
    %1862 = vmatpush1.msra.mxu0 %v1828
    %1863 = vmatprep.subr.mxu0 0.0
    %1864 = vmatpush1.msra.mxu0 %v1829
    %1865 = vmatprep.subr.mxu0 0.0
    %1866 = vmatpush1.msra.mxu0 %v1830
    %1867 = vmatprep.subr.mxu0 0.0
    %1868 = vmatpush1.msra.mxu0 %v1831
    %1869 = vmatprep.subr.mxu0 0.0
    %1870 = vmatpush1.msra.mxu0 %v1832
    %1871 = vmatprep.subr.mxu0 0.0
    %1872 = vmatpush1.msra.mxu0 %v1833
    %1873 = vmatprep.subr.mxu0 0.0
    %1874 = vmatpush1.msra.mxu0 %v1834
    %1875 = vmatprep.subr.mxu0 0.0
    %1876 = vmatpush1.msra.mxu0 %v1835
    %1877 = vmatprep.subr.mxu0 0.0
    %1878 = vmatpush1.msra.mxu0 %v1836
    %1879 = vmatprep.subr.mxu0 0.0
    %1880 = vmatpush1.msra.mxu0 %v1837
    %1881 = vmatprep.subr.mxu0 0.0
    %1882 = vmatpush1.msra.mxu0 %v1838
    %1883 = vmatprep.subr.mxu0 0.0
    %1884 = vmatpush1.msra.mxu0 %v1839
    %1885 = vmatprep.subr.mxu0 0.0
    %1886 = vmatpush1.msra.mxu0 %v1840
    %1887 = vmatprep.subr.mxu0 0.0
    %1888 = vmatpush1.msra.mxu0 %v1841
    %1889 = vmatprep.subr.mxu0 0.0
    %1890 = vmatpush1.msra.mxu0 %v1842
    %1891 = vmatprep.subr.mxu0 0.0
    %1892 = vmatpush1.msra.mxu0 %v1843
    %1893 = vmatprep.subr.mxu0 0.0
    %1894 = vmatpush1.msra.mxu0 %v1844
    %1895 = vmatprep.subr.mxu0 0.0
    %1896 = vmatpush1.msra.mxu0 %v1845
    %1897 = vmatprep.subr.mxu0 0.0
    %1898 = vmatpush1.msra.mxu0 %v1846
    %1899 = vmatprep.subr.mxu0 0.0
    %1900 = vmatpush1.msra.mxu0 %v1847
    %1901 = vmatprep.subr.mxu0 0.0
    %1902 = vmatpush1.msra.mxu0 %v1848
    %1903 = vmatprep.subr.mxu0 0.0
    %1904 = vmatpush1.msra.mxu0 %v1849
    %1905 = vmatprep.subr.mxu0 0.0
    %1906 = vmatpush1.msra.mxu0 %v1850
    %1907 = vmatprep.subr.mxu0 0.0
    %1908 = vmatpush1.msra.mxu0 %v1851
    %1909 = vmatprep.subr.mxu0 0.0
    %1910 = vmatpush1.msra.mxu0 %v1852
    %1911 = vmatprep.subr.mxu0 0.0
    %1912 = vmatpush1.msra.mxu0 %v1853
    %1913 = vmatprep.subr.mxu0 0.0
    %1914 = vmatpush1.msra.mxu0 %v1854
    %1915 = vmatprep.subr.mxu0 0.0
    %1916 = vmatpush1.msra.mxu0 %v1855
    %1917 = vmatprep.subr.mxu0 0.0
    %1918 = vmatpush1.msra.mxu0 %v1856
    %1919 = vmatprep.subr.mxu0 0.0
    %1920 = vmatpush1.msra.mxu0 %v1857
    %1921 = vmatprep.subr.mxu0 0.0
    %1922 = vmatpush1.msra.mxu0 %v1858
    %1923 = vmatprep.subr.mxu0 0.0
    %1924 = vmatpush1.msra.mxu0 %v1859
    %1925 = vmatprep.mubr.f32.mxu0 %v1813
    %1926 = vmatmul.mubr.f32.gmra.mrb[0].mxu0 %v1812
    %v1927 = vpop.f32.mrb[0].mxu0
    %v1928 = vadd.f32 0.0, %v1927
    %v1929 = vpop.f32.mrb[0].mxu0
    %1930 = vmatprep.mubr.f32.mxu0 %v1815
    %1931 = vmatmul.mubr.f32.gmra.mrb[0].mxu0 %v1814
    %v1932 = vpop.f32.mrb[0].mxu0
    %v1933 = vadd.f32 0.0, %v1932
    %v1934 = vpop.f32.mrb[0].mxu0
    %1935 = vmatprep.mubr.f32.mxu0 %v1817
    %1936 = vmatmul.mubr.f32.gmra.mrb[0].mxu0 %v1816
    %v1937 = vpop.f32.mrb[0].mxu0
    %v1938 = vadd.f32 0.0, %v1937
    %v1939 = vpop.f32.mrb[0].mxu0
    %1940 = vmatprep.mubr.f32.mxu0 %v1819
    %1941 = vmatmul.mubr.f32.gmra.mrb[0].mxu0 %v1818
    %v1942 = vpop.f32.mrb[0].mxu0
    %v1943 = vadd.f32 0.0, %v1942
    %v1944 = vpop.f32.mrb[0].mxu0
    %1945 = vmatprep.mubr.f32.mxu0 %v1821
    %1946 = vmatmul.mubr.f32.gmra.mrb[0].mxu0 %v1820
    %v1947 = vpop.f32.mrb[0].mxu0
    %v1948 = vadd.f32 0.0, %v1947
    %v1949 = vpop.f32.mrb[0].mxu0
    %1950 = vmatprep.mubr.f32.mxu0 %v1823
    %1951 = vmatmul.mubr.f32.gmra.mrb[0].mxu0 %v1822
    %v1952 = vpop.f32.mrb[0].mxu0
    %v1953 = vadd.f32 0.0, %v1952
    %v1954 = vpop.f32.mrb[0].mxu0
    %1955 = vmatprep.mubr.f32.mxu0 %v1825
    %1956 = vmatmul.mubr.f32.gmra.mrb[0].mxu0 %v1824
    %v1957 = vpop.f32.mrb[0].mxu0
    %v1958 = vadd.f32 0.0, %v1957
    %v1959 = vpop.f32.mrb[0].mxu0
    %1960 = vmatprep.mubr.f32.mxu0 %v1827
    %1961 = vmatmul.mubr.f32.gmra.mrb[0].mxu0 %v1826
    %v1962 = vpop.f32.mrb[0].mxu0
    %v1963 = vadd.f32 0.0, %v1962
    %v1964 = vpop.f32.mrb[0].mxu0
    %1965 = vdwg.mxu0
    %v1966 = vpack.c.bf16 %v1933, %v1928
    %v1967 = vpack.c.bf16 %v1943, %v1938
    %v1968 = vpack.c.bf16 %v1953, %v1948
    %v1969 = vpack.c.bf16 %v1963, %v1958
    %v1971 = vlaneseq
    %v1972 = vshrl.u32 %v1971, 7
    %v1973 = vsub.s32 0, %v1972
    %v1974 = vrot.slane %v1860, %v1973
    %1976 = vmatprep.subr.bf16.mxu0 0
    %1977 = vmatpush1.bf16.msra.mxu0 %v1966
    %1978 = vmatprep.subr.bf16.mxu0 0
    %1979 = vmatpush1.bf16.msra.mxu0 %v1967
    %1980 = vmatprep.subr.bf16.mxu0 0
    %1981 = vmatpush1.bf16.msra.mxu0 %v1968
    %1982 = vmatprep.subr.bf16.mxu0 0
    %1983 = vmatpush1.bf16.msra.mxu0 %v1969
    %1984 = vmatprep.subr.bf16.mxu0 0
    %1985 = vmatpush1.bf16.msra.mxu0 0
    %1986 = vmatprep.subr.bf16.mxu0 0
    %1987 = vmatpush1.bf16.msra.mxu0 0
    %1988 = vmatprep.subr.bf16.mxu0 0
    %1989 = vmatpush1.bf16.msra.mxu0 0
    %1990 = vmatprep.subr.bf16.mxu0 0
    %1991 = vmatpush1.bf16.msra.mxu0 0
    %1992 = vmatprep.subr.bf16.mxu0 0
    %1993 = vmatpush1.bf16.msra.mxu0 0
    %1994 = vmatprep.subr.bf16.mxu0 0
    %1995 = vmatpush1.bf16.msra.mxu0 0
    %1996 = vmatprep.subr.bf16.mxu0 0
    %1997 = vmatpush1.bf16.msra.mxu0 0
    %1998 = vmatprep.subr.bf16.mxu0 0
    %1999 = vmatpush1.bf16.msra.mxu0 0
    %2000 = vmatprep.subr.bf16.mxu0 0
    %2001 = vmatpush1.bf16.msra.mxu0 0
    %2002 = vmatprep.subr.bf16.mxu0 0
    %2003 = vmatpush1.bf16.msra.mxu0 0
    %2004 = vmatprep.subr.bf16.mxu0 0
    %2005 = vmatpush1.bf16.msra.mxu0 0
    %2006 = vmatprep.subr.bf16.mxu0 0
    %2007 = vmatpush1.bf16.msra.mxu0 0
    %2008 = vmatprep.mubr.bf16.mxu0 0
    %2009 = vmatmul.mubr.bf16.gmra.mrb[0].mxu0 %v217
    %v2010 = vpop.f32.mrb[0].mxu0
    %v2011 = vadd.f32 %v1974, %v2010
    %v2012 = vpop.f32.mrb[0].mxu0
    %v2013 = vpop.f32.mrb[0].mxu0
    %v2014 = vadd.f32 %v1974, %v2013
    %v2015 = vpop.f32.mrb[0].mxu0
    %2016 = vmatprep.mubr.bf16.mxu0 0
    %2017 = vmatmul.mubr.bf16.gmra.mrb[0].mxu0 %v220
    %v2018 = vpop.f32.mrb[0].mxu0
    %v2019 = vadd.f32 %v1974, %v2018
    %v2020 = vpop.f32.mrb[0].mxu0
    %v2021 = vpop.f32.mrb[0].mxu0
    %v2022 = vadd.f32 %v1974, %v2021
    %v2023 = vpop.f32.mrb[0].mxu0
    %2024 = vmatprep.mubr.bf16.mxu0 0
    %2025 = vmatmul.mubr.bf16.gmra.mrb[0].mxu0 %v223
    %v2026 = vpop.f32.mrb[0].mxu0
    %v2027 = vadd.f32 %v1974, %v2026
    %v2028 = vpop.f32.mrb[0].mxu0
    %v2029 = vpop.f32.mrb[0].mxu0
    %v2030 = vadd.f32 %v1974, %v2029
    %v2031 = vpop.f32.mrb[0].mxu0
    %2032 = vmatprep.mubr.bf16.mxu0 0
    %2033 = vmatmul.mubr.bf16.gmra.mrb[0].mxu0 %v226
    %v2034 = vpop.f32.mrb[0].mxu0
    %v2035 = vadd.f32 %v1974, %v2034
    %v2036 = vpop.f32.mrb[0].mxu0
    %v2037 = vpop.f32.mrb[0].mxu0
    %v2038 = vadd.f32 %v1974, %v2037
    %v2039 = vpop.f32.mrb[0].mxu0
    %2040 = vdwg.mxu0
    %2041 = vst [vmem:[#allocation16] sm:$0xff] %v2011
    %2042 = vst [vmem:[#allocation16 + $0x8] sm:$0xff] %v2014
    %2043 = vst [vmem:[#allocation16 + $0x10] sm:$0xff] %v2019
    %2044 = vst [vmem:[#allocation16 + $0x18] sm:$0xff] %v2022
    %2045 = vst [vmem:[#allocation16 + $0x20] sm:$0xff] %v2027
    %2046 = vst [vmem:[#allocation16 + $0x28] sm:$0xff] %v2030
    %2047 = vst [vmem:[#allocation16 + $0x30] sm:$0xff] %v2035
    %2048 = vst [vmem:[#allocation16 + $0x38] sm:$0xff] %v2038
    // Predicated region
    $region90: #{tpu_custom_call.1} parent=1 // pred_check
      _
    $region91: #{tpu_custom_call.1} parent=1 // pred_check_branch
      %2050 = sbr.rel (0) target = $region93
    $region92: #{tpu_custom_call.1} parent=1 // pred_region
      %s2052 = ssub.s32 1024, 1024
      %2053 = vsyncadd [#allocation4], %s2052
      %s2054 = sshll.u32 [#allocation16], 4
      %s2055 = int_to_ptr.vmem [resolvable:$true] %s2054
      %2060 = dma.vmem_to_hbm [thread:$0]  %s2055, 1024, %s14, [#allocation4], 128, 128, 8
    $region93: #{tpu_custom_call.1} parent=1 // pred_fallthru
      _
    // Predicated region
    $region94: #{tpu_custom_call.1} parent=1 // pred_check
      _
    $region95: #{tpu_custom_call.1} parent=1 // pred_check_branch
      %2062 = sbr.rel (0) target = $region97
    $region96: #{tpu_custom_call.1} parent=1 // pred_region
      %2063 = dma.done [#allocation4], 1024
    $region97: #{tpu_custom_call.1} parent=1 // pred_fallthru
      _
    %2064 = vsyncpa [#allocation3], 1
    %2065 = vsyncpa [#allocation6], 1
    %2066 = vsyncpa [#allocation9], 1
    %2067 = vsyncpa [#allocation12], 1
    %2068 = vsyncpa [#allocation15], 1
    %2069 = vsyncpa [#allocation4], 1

</llo_original>
